<compile_context>
chip_gen: v7x
topology: tpu7x:2x2x1
jax: 0.10.0
libtpu: 0.0.40
codegen_flags: <defaults>
</compile_context>

<pallas_src>
import jax
import jax.numpy as jnp
from jax import lax
from jax.experimental import pallas as pl
from jax.experimental.pallas import tpu as pltpu

# ---- module hyper-parameters ----
DIM = 32
NUM_HEADS = 4
HEAD_DIM = DIM // NUM_HEADS
SCALE = HEAD_DIM ** (-0.5)


def msa_kernel(xt_ref, wqkv_ref, wp_ref, bproj_ref, out_ref):
    """Fused qkv-projection + MHA + output-projection for a block of BB batches.

    xt_ref   : (BB, C, N)  bf16  tokens transposed (channels on sublanes, tokens on lanes)
    wqkv_ref : (3C, C)     bf16  qkv weight, output-channel-major; Q rows pre-scaled
    wp_ref   : (C, C)      bf16  proj weight in (in, out) layout
    bproj_ref: (1, C)      f32   proj bias
    out_ref  : (BB, N, C)
    """
    BB, C, N = xt_ref.shape
    H, HD = NUM_HEADS, C // NUM_HEADS

    wqkv = wqkv_ref[...]                                    # (3C, C) bf16
    wp = wp_ref[...]                                        # (C, C)  bf16
    bias = bproj_ref[...]                                   # (1, C)  f32

    for b in range(BB):                                     # BB <= 2, tiny static unroll
        xt = xt_ref[b]                                      # (C, N) bf16

        # --- QKV projection: one wide matmul (3C, C) @ (C, N) -> (3C, N), f32 acc.
        qkv = lax.dot_general(wqkv, xt, (((1,), (0,)), ((), ())),
                              preferred_element_type=jnp.float32)        # (3C, N)

        # Sublane slices / splits at multiples of 8 -> layout-free.
        q = qkv[0 * C:1 * C].astype(jnp.bfloat16).reshape(H, HD, N)      # (H, hd, N)
        k = qkv[1 * C:2 * C].astype(jnp.bfloat16).reshape(H, HD, N)
        v = qkv[2 * C:3 * C].astype(jnp.bfloat16).reshape(H, HD, N)

        # --- scores: per-head (q*scale)^T @ k, contraction over hd (sublanes).
        s = lax.dot_general(q, k, (((1,), (1,)), ((0,), (0,))),
                            preferred_element_type=jnp.float32)          # (H, N, N)

        # --- softmax over keys (lane axis); elementwise math kept in f32.
        m = jnp.max(s, axis=-1, keepdims=True)                           # (H, N, 1)
        p = jnp.exp(s - m)                                               # (H, N, N)
        l = jnp.sum(p, axis=-1, keepdims=True)                           # (H, N, 1)
        p = p * pl.reciprocal(l, approx=False)                           # EUP reciprocal
        p = p.astype(jnp.bfloat16)

        # --- attn @ v: contraction over keys (lane axis of both) -> (H, hd, Nq).
        o = lax.dot_general(v, p, (((2,), (2,)), ((0,), (0,))),
                            preferred_element_type=jnp.float32)          # (H, hd, N)

        # --- output projection with head-concat folded in:
        # (H, hd, N) -> (C, N) is a tile-aligned sublane merge (free), then o^T @ Wp.
        o = o.reshape(C, N).astype(jnp.bfloat16)                         # (C, N)
        y = lax.dot_general(o, wp, (((0,), (0,)), ((), ())),
                            preferred_element_type=jnp.float32)          # (N, C)
        y = y + bias                                                     # + (1, C) bias

        out_ref[b] = y.astype(out_ref.dtype)


def multi_scale_attention(x, thw_shape, w_qkv, w_proj, b_proj):
    """Wrapper: one pallas_call; weights reorganised once, activations pre-transposed."""
    B, N, C = x.shape
    assert C == DIM and C % NUM_HEADS == 0

    # v7x has 2 TensorCores/chip -> split the batch across a 2-wide "parallel" grid.
    # v5e/v6e (1 TC) keep grid=(1,) (single invocation, no per-step overhead).
    num_splits = 1
    try:
        kind = jax.devices()[0].device_kind.lower()
        if "7" in kind and B % 2 == 0:
            num_splits = 2
    except Exception:
        num_splits = 1
    BB = B // num_splits

    # ---- one-time constant weight re-blocking (hoist to init time in real use) ----
    # qkv weight column layout along 3C is [3, num_heads, head_dim].
    w_q = w_qkv[:, 0 * C:1 * C] * SCALE                 # fold softmax scale into Q
    w_k = w_qkv[:, 1 * C:2 * C]
    w_v = w_qkv[:, 2 * C:3 * C]
    wqkv_t = jnp.concatenate([w_q, w_k, w_v], axis=1).T.astype(jnp.bfloat16)   # (3C, C)
    wp = w_proj.astype(jnp.bfloat16)                                            # (C, C)
    bproj = b_proj.reshape(1, C).astype(jnp.float32)

    # Tokens transposed: channels on sublanes, tokens on lanes; bf16 for the MXU.
    xt = jnp.swapaxes(x, 1, 2).astype(jnp.bfloat16)                             # (B, C, N)

    H = NUM_HEADS
    flops = 2 * B * N * (3 * C * C + 2 * N * C + C * C)      # qkv + qk^T + attn@v + proj
    transcendentals = B * H * N * N + B * H * N              # exp + reciprocal
    bytes_accessed = (B * C * N + 3 * C * C + C * C) * 2 + (B * N * C + C) * 4

    out = pl.pallas_call(
        msa_kernel,
        out_shape=jax.ShapeDtypeStruct((B, N, C), x.dtype),
        grid=(num_splits,),
        in_specs=[
            pl.BlockSpec((BB, C, N), lambda i: (i, 0, 0)),
            pl.BlockSpec((3 * C, C), lambda i: (0, 0)),
            pl.BlockSpec((C, C), lambda i: (0, 0)),
            pl.BlockSpec((1, C), lambda i: (0, 0)),
        ],
        out_specs=pl.BlockSpec((BB, N, C), lambda i: (i, 0, 0)),
        cost_estimate=pl.CostEstimate(
            flops=int(flops),
            transcendentals=int(transcendentals),
            bytes_accessed=int(bytes_accessed),
        ),
        compiler_params=pltpu.CompilerParams(
            dimension_semantics=("parallel",),
            vmem_limit_bytes=16 * 1024 * 1024,
        ),
    )(xt, wqkv_t, wp, bproj)

    # attention_pool with pool=None returns thw_shape unchanged -> q_shape == thw_shape
    return out, list(thw_shape)


def reference(x, w_qkv, w_proj, b_proj):
    """Pure-JAX (f32) re-implementation of the PyTorch forward, for correctness check."""
    B, N, C = x.shape
    qkv = x @ w_qkv                                                    # (B, N, 3C)
    qkv = qkv.reshape(B, N, 3, NUM_HEADS, HEAD_DIM).transpose(2, 0, 3, 1, 4)
    q, k, v = qkv[0], qkv[1], qkv[2]                                   # (B, H, N, hd)
    attn = (q * SCALE) @ jnp.swapaxes(k, -2, -1)
    attn = jax.nn.softmax(attn, axis=-1)
    o = attn @ v                                                       # (B, H, N, hd)
    o = jnp.swapaxes(o, 1, 2).reshape(B, N, C)
    return o @ w_proj + b_proj


if __name__ == "__main__":
    # Small shapes consistent with the module: thw = (2, 4, 4), cls token -> N = 33.
    B = 2
    thw_shape = (2, 4, 4)
    N = 1 + thw_shape[0] * thw_shape[1] * thw_shape[2]   # 33 (has_cls_embed=True)
    C = DIM

    key = jax.random.PRNGKey(0)
    kx, kq, kp, kb = jax.random.split(key, 4)
    x = jax.random.normal(kx, (B, N, C), dtype=jnp.float32)
    # Deterministic synthetic parameters; Linear weights in (in, out) layout
    # (equivalent to PyTorch's x @ W.T with W of shape (out, in)).
    w_qkv = 0.05 * jax.random.normal(kq, (C, 3 * C), dtype=jnp.float32)   # qkv_bias=False
    w_proj = 0.05 * jax.random.normal(kp, (C, C), dtype=jnp.float32)
    b_proj = 0.01 * jax.random.normal(kb, (1, C), dtype=jnp.float32)

    out, q_shape = multi_scale_attention(x, thw_shape, w_qkv, w_proj, b_proj)
    out = jax.block_until_ready(out)

    ref = reference(x, w_qkv, w_proj, b_proj)
    assert out.shape == (B, N, C)
    assert q_shape == list(thw_shape)
    # Tolerance accounts for bf16 MXU operands (f32 accumulation, f32 softmax math).
    err = float(jnp.max(jnp.abs(out - ref)))
    assert err < 1e-2, f"mismatch vs reference: max abs err {err}"

    print("KERNEL_OK")
</pallas_src>

<mosaic_0001>
module attributes {stable_mosaic.version = 11 : i64} {
  func.func @msa_kernel(%arg0: i32, %arg1: memref<2x32x33xbf16, #tpu.memory_space<vmem>>, %arg2: memref<96x32xbf16, #tpu.memory_space<vmem>>, %arg3: memref<32x32xbf16, #tpu.memory_space<vmem>>, %arg4: memref<1x32xf32, #tpu.memory_space<vmem>>, %arg5: memref<2x33x32xf32, #tpu.memory_space<vmem>>) attributes {dimension_semantics = [#tpu.dimension_semantics<parallel>], iteration_bounds = array<i64: 1>, scalar_prefetch = 0 : i64, scratch_operands = 0 : i64, tpu.core_type = #tpu.core_type<tc>, window_params = [{transform_indices = @transform_0, window_bounds = array<i64: 2, 32, 33>}, {pipeline_mode = #tpu.pipeline_mode<synchronous>, transform_indices = @transform_1, window_bounds = array<i64: 96, 32>}, {pipeline_mode = #tpu.pipeline_mode<synchronous>, transform_indices = @transform_2, window_bounds = array<i64: 32, 32>}, {pipeline_mode = #tpu.pipeline_mode<synchronous>, transform_indices = @transform_3, window_bounds = array<i64: 1, 32>}, {transform_indices = @transform_4, window_bounds = array<i64: 2, 33, 32>}]} {
    %c0 = arith.constant 0 : index
    %c0_0 = arith.constant 0 : index
    %0 = vector.load %arg2[%c0, %c0_0] : memref<96x32xbf16, #tpu.memory_space<vmem>>, vector<96x32xbf16>
    %c0_1 = arith.constant 0 : index
    %c0_2 = arith.constant 0 : index
    %1 = vector.load %arg3[%c0_1, %c0_2] : memref<32x32xbf16, #tpu.memory_space<vmem>>, vector<32x32xbf16>
    %c0_3 = arith.constant 0 : index
    %c0_4 = arith.constant 0 : index
    %2 = vector.load %arg4[%c0_3, %c0_4] : memref<1x32xf32, #tpu.memory_space<vmem>>, vector<1x32xf32>
    %c0_5 = arith.constant 0 : index
    %c0_6 = arith.constant 0 : index
    %c0_7 = arith.constant 0 : index
    %3 = vector.load %arg1[%c0_5, %c0_6, %c0_7] : memref<2x32x33xbf16, #tpu.memory_space<vmem>>, vector<1x32x33xbf16>
    %4 = vector.shape_cast %3 : vector<1x32x33xbf16> to vector<32x33xbf16>
    %cst = arith.constant dense<0.000000e+00> : vector<96x33xf32>
    %5 = tpu.matmul %0, %4, %cst {dimension_numbers = #tpu.dot_dimension_numbers<[1], [0], [0], [1], [0, 0, 1, 1], [], []>} : vector<96x32xbf16>, vector<32x33xbf16>, vector<96x33xf32> -> vector<96x33xf32>
    %6 = vector.extract_strided_slice %5 {offsets = [0, 0], sizes = [32, 33], strides = [1, 1]} : vector<96x33xf32> to vector<32x33xf32>
    %7 = arith.truncf %6 : vector<32x33xf32> to vector<32x33xbf16>
    %8 = vector.shape_cast %7 : vector<32x33xbf16> to vector<4x8x33xbf16>
    %9 = vector.extract_strided_slice %5 {offsets = [32, 0], sizes = [32, 33], strides = [1, 1]} : vector<96x33xf32> to vector<32x33xf32>
    %10 = arith.truncf %9 : vector<32x33xf32> to vector<32x33xbf16>
    %11 = vector.shape_cast %10 : vector<32x33xbf16> to vector<4x8x33xbf16>
    %12 = vector.extract_strided_slice %5 {offsets = [64, 0], sizes = [32, 33], strides = [1, 1]} : vector<96x33xf32> to vector<32x33xf32>
    %13 = arith.truncf %12 : vector<32x33xf32> to vector<32x33xbf16>
    %14 = vector.shape_cast %13 : vector<32x33xbf16> to vector<4x8x33xbf16>
    %cst_8 = arith.constant dense<0.000000e+00> : vector<4x33x33xf32>
    %15 = tpu.matmul %8, %11, %cst_8 {dimension_numbers = #tpu.dot_dimension_numbers<[1], [1], [2], [2], [0, 0, 0, 2, 1, 2], [0], [0]>} : vector<4x8x33xbf16>, vector<4x8x33xbf16>, vector<4x33x33xf32> -> vector<4x33x33xf32>
    %cst_9 = arith.constant dense<0xFF800000> : vector<4x33xf32>
    %16 = vector.multi_reduction <maximumf>, %15, %cst_9 [2] : vector<4x33x33xf32> to vector<4x33xf32>
    %17 = vector.shape_cast %16 : vector<4x33xf32> to vector<4x33x1xf32>
    %18 = vector.broadcast %17 : vector<4x33x1xf32> to vector<4x33x33xf32>
    %19 = arith.subf %15, %18 : vector<4x33x33xf32>
    %20 = math.exp %19 : vector<4x33x33xf32>
    %cst_10 = arith.constant dense<0.000000e+00> : vector<4x33xf32>
    %21 = vector.multi_reduction <add>, %20, %cst_10 [2] : vector<4x33x33xf32> to vector<4x33xf32>
    %22 = vector.shape_cast %21 : vector<4x33xf32> to vector<4x33x1xf32>
    %23 = tpu.reciprocal %22 : vector<4x33x1xf32> -> vector<4x33x1xf32>
    %24 = vector.broadcast %23 : vector<4x33x1xf32> to vector<4x33x33xf32>
    %25 = arith.mulf %20, %24 : vector<4x33x33xf32>
    %26 = arith.truncf %25 : vector<4x33x33xf32> to vector<4x33x33xbf16>
    %cst_11 = arith.constant dense<0.000000e+00> : vector<4x8x33xf32>
    %27 = tpu.matmul %14, %26, %cst_11 {dimension_numbers = #tpu.dot_dimension_numbers<[2], [2], [1], [1], [0, 0, 0, 1, 1, 1], [0], [0]>} : vector<4x8x33xbf16>, vector<4x33x33xbf16>, vector<4x8x33xf32> -> vector<4x8x33xf32>
    %28 = vector.shape_cast %27 : vector<4x8x33xf32> to vector<32x33xf32>
    %29 = arith.truncf %28 : vector<32x33xf32> to vector<32x33xbf16>
    %cst_12 = arith.constant dense<0.000000e+00> : vector<33x32xf32>
    %30 = tpu.matmul %29, %1, %cst_12 {dimension_numbers = #tpu.dot_dimension_numbers<[0], [0], [1], [1], [0, 1, 1, 1], [], []>} : vector<32x33xbf16>, vector<32x32xbf16>, vector<33x32xf32> -> vector<33x32xf32>
    %31 = vector.broadcast %2 : vector<1x32xf32> to vector<33x32xf32>
    %32 = arith.addf %30, %31 : vector<33x32xf32>
    %c0_13 = arith.constant 0 : index
    %c0_14 = arith.constant 0 : index
    %c0_15 = arith.constant 0 : index
    %33 = vector.load %arg5[%c0_13, %c0_14, %c0_15] : memref<2x33x32xf32, #tpu.memory_space<vmem>>, vector<1x33x32xf32>
    %34 = vector.shape_cast %33 : vector<1x33x32xf32> to vector<33x32xf32>
    %35 = vector.shape_cast %32 : vector<33x32xf32> to vector<1x33x32xf32>
    tpu.vector_store %arg5[%c0_13, %c0_14, %c0_15], %35 {strides = array<i32>} : memref<2x33x32xf32, #tpu.memory_space<vmem>>, vector<1x33x32xf32>,
    %c1 = arith.constant 1 : index
    %c0_16 = arith.constant 0 : index
    %c0_17 = arith.constant 0 : index
    %36 = vector.load %arg1[%c1, %c0_16, %c0_17] : memref<2x32x33xbf16, #tpu.memory_space<vmem>>, vector<1x32x33xbf16>
    %37 = vector.shape_cast %36 : vector<1x32x33xbf16> to vector<32x33xbf16>
    %cst_18 = arith.constant dense<0.000000e+00> : vector<96x33xf32>
    %38 = tpu.matmul %0, %37, %cst_18 {dimension_numbers = #tpu.dot_dimension_numbers<[1], [0], [0], [1], [0, 0, 1, 1], [], []>} : vector<96x32xbf16>, vector<32x33xbf16>, vector<96x33xf32> -> vector<96x33xf32>
    %39 = vector.extract_strided_slice %38 {offsets = [0, 0], sizes = [32, 33], strides = [1, 1]} : vector<96x33xf32> to vector<32x33xf32>
    %40 = arith.truncf %39 : vector<32x33xf32> to vector<32x33xbf16>
    %41 = vector.shape_cast %40 : vector<32x33xbf16> to vector<4x8x33xbf16>
    %42 = vector.extract_strided_slice %38 {offsets = [32, 0], sizes = [32, 33], strides = [1, 1]} : vector<96x33xf32> to vector<32x33xf32>
    %43 = arith.truncf %42 : vector<32x33xf32> to vector<32x33xbf16>
    %44 = vector.shape_cast %43 : vector<32x33xbf16> to vector<4x8x33xbf16>
    %45 = vector.extract_strided_slice %38 {offsets = [64, 0], sizes = [32, 33], strides = [1, 1]} : vector<96x33xf32> to vector<32x33xf32>
    %46 = arith.truncf %45 : vector<32x33xf32> to vector<32x33xbf16>
    %47 = vector.shape_cast %46 : vector<32x33xbf16> to vector<4x8x33xbf16>
    %cst_19 = arith.constant dense<0.000000e+00> : vector<4x33x33xf32>
    %48 = tpu.matmul %41, %44, %cst_19 {dimension_numbers = #tpu.dot_dimension_numbers<[1], [1], [2], [2], [0, 0, 0, 2, 1, 2], [0], [0]>} : vector<4x8x33xbf16>, vector<4x8x33xbf16>, vector<4x33x33xf32> -> vector<4x33x33xf32>
    %cst_20 = arith.constant dense<0xFF800000> : vector<4x33xf32>
    %49 = vector.multi_reduction <maximumf>, %48, %cst_20 [2] : vector<4x33x33xf32> to vector<4x33xf32>
    %50 = vector.shape_cast %49 : vector<4x33xf32> to vector<4x33x1xf32>
    %51 = vector.broadcast %50 : vector<4x33x1xf32> to vector<4x33x33xf32>
    %52 = arith.subf %48, %51 : vector<4x33x33xf32>
    %53 = math.exp %52 : vector<4x33x33xf32>
    %cst_21 = arith.constant dense<0.000000e+00> : vector<4x33xf32>
    %54 = vector.multi_reduction <add>, %53, %cst_21 [2] : vector<4x33x33xf32> to vector<4x33xf32>
    %55 = vector.shape_cast %54 : vector<4x33xf32> to vector<4x33x1xf32>
    %56 = tpu.reciprocal %55 : vector<4x33x1xf32> -> vector<4x33x1xf32>
    %57 = vector.broadcast %56 : vector<4x33x1xf32> to vector<4x33x33xf32>
    %58 = arith.mulf %53, %57 : vector<4x33x33xf32>
    %59 = arith.truncf %58 : vector<4x33x33xf32> to vector<4x33x33xbf16>
    %cst_22 = arith.constant dense<0.000000e+00> : vector<4x8x33xf32>
    %60 = tpu.matmul %47, %59, %cst_22 {dimension_numbers = #tpu.dot_dimension_numbers<[2], [2], [1], [1], [0, 0, 0, 1, 1, 1], [0], [0]>} : vector<4x8x33xbf16>, vector<4x33x33xbf16>, vector<4x8x33xf32> -> vector<4x8x33xf32>
    %61 = vector.shape_cast %60 : vector<4x8x33xf32> to vector<32x33xf32>
    %62 = arith.truncf %61 : vector<32x33xf32> to vector<32x33xbf16>
    %cst_23 = arith.constant dense<0.000000e+00> : vector<33x32xf32>
    %63 = tpu.matmul %62, %1, %cst_23 {dimension_numbers = #tpu.dot_dimension_numbers<[0], [0], [1], [1], [0, 1, 1, 1], [], []>} : vector<32x33xbf16>, vector<32x32xbf16>, vector<33x32xf32> -> vector<33x32xf32>
    %64 = vector.broadcast %2 : vector<1x32xf32> to vector<33x32xf32>
    %65 = arith.addf %63, %64 : vector<33x32xf32>
    %c1_24 = arith.constant 1 : index
    %c0_25 = arith.constant 0 : index
    %c0_26 = arith.constant 0 : index
    %66 = vector.load %arg5[%c1_24, %c0_25, %c0_26] : memref<2x33x32xf32, #tpu.memory_space<vmem>>, vector<1x33x32xf32>
    %67 = vector.shape_cast %66 : vector<1x33x32xf32> to vector<33x32xf32>
    %68 = vector.shape_cast %65 : vector<33x32xf32> to vector<1x33x32xf32>
    tpu.vector_store %arg5[%c1_24, %c0_25, %c0_26], %68 {strides = array<i32>} : memref<2x33x32xf32, #tpu.memory_space<vmem>>, vector<1x33x32xf32>,
    return
  }
  func.func @transform_0(%arg0: i32) -> (i32, i32, i32) {
    %c0_i32 = arith.constant 0 : i32
    %c0_i32_0 = arith.constant 0 : i32
    %c0_i32_1 = arith.constant 0 : i32
    return %arg0, %c0_i32, %c0_i32_0 : i32, i32, i32
  }
  func.func @transform_1(%arg0: i32) -> (i32, i32) {
    %c0_i32 = arith.constant 0 : i32
    %c0_i32_0 = arith.constant 0 : i32
    %c0_i32_1 = arith.constant 0 : i32
    return %c0_i32, %c0_i32_0 : i32, i32
  }
  func.func @transform_2(%arg0: i32) -> (i32, i32) {
    %c0_i32 = arith.constant 0 : i32
    %c0_i32_0 = arith.constant 0 : i32
    %c0_i32_1 = arith.constant 0 : i32
    return %c0_i32, %c0_i32_0 : i32, i32
  }
  func.func @transform_3(%arg0: i32) -> (i32, i32) {
    %c0_i32 = arith.constant 0 : i32
    %c0_i32_0 = arith.constant 0 : i32
    %c0_i32_1 = arith.constant 0 : i32
    return %c0_i32, %c0_i32_0 : i32, i32
  }
  func.func @transform_4(%arg0: i32) -> (i32, i32, i32) {
    %c0_i32 = arith.constant 0 : i32
    %c0_i32_0 = arith.constant 0 : i32
    %c0_i32_1 = arith.constant 0 : i32
    return %arg0, %c0_i32, %c0_i32_0 : i32, i32, i32
  }
}

</mosaic_0001>

<llo_original>
// kernel: tpu_custom_call.1
$region0: #{tpu_custom_call.1}
  #allocation0 [shape = 'u32[]', space=smem, size = 0x4, offset = 0x4, fixed_abs, tag = 'smem constant byte address 0x4 - core index']
  #allocation1 [shape = 'u32[144,128]{1,0:T(1,128)}', space=vmem, size = 0x12000, scoped, tag = 'internal scratch']
  %s0 = inlined_call_operand.vmem [shape: bf16[2,32,33], index: 0, kind: input, shape index: {}]
  %s1 = inlined_call_operand.vmem [shape: bf16[96,32], index: 1, kind: input, shape index: {}]
  %s2 = inlined_call_operand.vmem [shape: bf16[32,32], index: 2, kind: input, shape index: {}]
  %s3 = inlined_call_operand.vmem [shape: f32[1,32], index: 3, kind: input, shape index: {}]
  %s4 = inlined_call_operand.vmem [shape: f32[2,33,32], index: 4, kind: output, shape index: {}]
  %s5 = sld [smem:[#allocation0]]
  $region26: #{tpu_custom_call.1} parent=0
    _
  %s7 = ssub.s32 1, %s5
  %s8 = scalar_select 0, %s7, %s5
  // Predicated region
  $region2: #{tpu_custom_call.1} parent=0 // pred_check
    _
  $region3: #{tpu_custom_call.1} parent=0 // pred_check_branch
    %10 = sbr.rel (0) target = $region5
  $region4: #{tpu_custom_call.1} parent=0 // pred_region
    _
  $region5: #{tpu_custom_call.1} parent=0 // pred_fallthru
    _
  // Predicated region
  $region6: #{tpu_custom_call.1} parent=0 // pred_check
    _
  $region7: #{tpu_custom_call.1} parent=0 // pred_check_branch
    %12 = sbr.rel (0) target = $region9
  $region8: #{tpu_custom_call.1} parent=0 // pred_region
    _
  $region9: #{tpu_custom_call.1} parent=0 // pred_fallthru
    _
  // Predicated region
  $region10: #{tpu_custom_call.1} parent=0 // pred_check
    _
  $region11: #{tpu_custom_call.1} parent=0 // pred_check_branch
    %14 = sbr.rel (0) target = $region13
  $region12: #{tpu_custom_call.1} parent=0 // pred_region
    _
  $region13: #{tpu_custom_call.1} parent=0 // pred_fallthru
    _
  // Predicated region
  $region14: #{tpu_custom_call.1} parent=0 // pred_check
    _
  $region15: #{tpu_custom_call.1} parent=0 // pred_check_branch
    %16 = sbr.rel (0) target = $region17
  $region16: #{tpu_custom_call.1} parent=0 // pred_region
    _
  $region17: #{tpu_custom_call.1} parent=0 // pred_fallthru
    _
  %v18 = vld [vmem:[%s1] sm:$0xf]
  %v19 = vld [vmem:[%s1 + $0x4] sm:$0xf]
  %v20 = vld [vmem:[%s1 + $0x8] sm:$0xf]
  %v21 = vld [vmem:[%s1 + $0xc] sm:$0xf]
  %v22 = vld [vmem:[%s1 + $0x10] sm:$0xf]
  %v23 = vld [vmem:[%s1 + $0x14] sm:$0xf]
  %v24 = vld [vmem:[%s1 + $0x18] sm:$0xf]
  %v25 = vld [vmem:[%s1 + $0x1c] sm:$0xf]
  %v26 = vld [vmem:[%s1 + $0x20] sm:$0xf]
  %v27 = vld [vmem:[%s1 + $0x24] sm:$0xf]
  %v28 = vld [vmem:[%s1 + $0x28] sm:$0xf]
  %v29 = vld [vmem:[%s1 + $0x2c] sm:$0xf]
  %v30 = vld [vmem:[%s2] sm:$0xf]
  %v31 = vld [vmem:[%s2 + $0x4] sm:$0xf]
  %v32 = vld [vmem:[%s2 + $0x8] sm:$0xf]
  %v33 = vld [vmem:[%s2 + $0xc] sm:$0xf]
  %v34 = vld [vmem:[%s3] sm:$0x1]
  %v35 = vld [vmem:[%s0] sm:$0xf]
  %v36 = vld [vmem:[%s0 + $0x4] sm:$0xf]
  %v37 = vld [vmem:[%s0 + $0x8] sm:$0xf]
  %v38 = vld [vmem:[%s0 + $0xc] sm:$0xf]
  %v51 = vunpack.c.l.b16 %v18
  %v52 = vunpack.c.l.b16 %v19
  %v53 = vunpack.c.l.b16 %v20
  %v54 = vunpack.c.l.b16 %v21
  %v55 = vunpack.c.l.b16 %v22
  %v56 = vunpack.c.l.b16 %v23
  %v57 = vunpack.c.l.b16 %v24
  %v58 = vunpack.c.l.b16 %v25
  %v59 = vunpack.c.l.b16 %v26
  %v60 = vunpack.c.l.b16 %v27
  %v61 = vunpack.c.l.b16 %v28
  %v62 = vunpack.c.l.b16 %v29
  %v63 = vpack.c.b16 %v52, %v51
  %v64 = vpack.c.b16 %v54, %v53
  %v65 = vpack.c.b16 %v56, %v55
  %v66 = vpack.c.b16 %v58, %v57
  %v67 = vpack.c.b16 %v60, %v59
  %v68 = vpack.c.b16 %v62, %v61
  %v73 = vunpack.c.l.b16 %v35
  %v74 = vunpack.c.l.b16 %v36
  %v75 = vunpack.c.l.b16 %v37
  %v76 = vunpack.c.l.b16 %v38
  %v77 = vpack.c.b16 %v74, %v73
  %v78 = vpack.c.b16 %v76, %v75
  %vm81 = vcmask 261120
  %v83 = vsel %vm81, %v63, 0
  %v86 = vsel %vm81, %v64, 0
  %v89 = vsel %vm81, %v65, 0
  %v92 = vsel %vm81, %v66, 0
  %v95 = vsel %vm81, %v67, 0
  %v98 = vsel %vm81, %v68, 0
  %100 = vmatprep.subr.bf16.mxu0 0
  %101 = vmatpush1.bf16.msra.mxu0 %v77
  %102 = vmatprep.subr.bf16.mxu0 0
  %103 = vmatpush1.bf16.msra.mxu0 %v78
  %104 = vmatprep.subr.bf16.mxu0 0
  %105 = vmatpush1.bf16.msra.mxu0 0
  %106 = vmatprep.subr.bf16.mxu0 0
  %107 = vmatpush1.bf16.msra.mxu0 0
  %108 = vmatprep.subr.bf16.mxu0 0
  %109 = vmatpush1.bf16.msra.mxu0 0
  %110 = vmatprep.subr.bf16.mxu0 0
  %111 = vmatpush1.bf16.msra.mxu0 0
  %112 = vmatprep.subr.bf16.mxu0 0
  %113 = vmatpush1.bf16.msra.mxu0 0
  %114 = vmatprep.subr.bf16.mxu0 0
  %115 = vmatpush1.bf16.msra.mxu0 0
  %116 = vmatprep.subr.bf16.mxu0 0
  %117 = vmatpush1.bf16.msra.mxu0 0
  %118 = vmatprep.subr.bf16.mxu0 0
  %119 = vmatpush1.bf16.msra.mxu0 0
  %120 = vmatprep.subr.bf16.mxu0 0
  %121 = vmatpush1.bf16.msra.mxu0 0
  %122 = vmatprep.subr.bf16.mxu0 0
  %123 = vmatpush1.bf16.msra.mxu0 0
  %124 = vmatprep.subr.bf16.mxu0 0
  %125 = vmatpush1.bf16.msra.mxu0 0
  %126 = vmatprep.subr.bf16.mxu0 0
  %127 = vmatpush1.bf16.msra.mxu0 0
  %128 = vmatprep.subr.bf16.mxu0 0
  %129 = vmatpush1.bf16.msra.mxu0 0
  %130 = vmatprep.subr.bf16.mxu0 0
  %131 = vmatpush1.bf16.msra.mxu0 0
  %132 = vmatprep.mubr.bf16.mxu0 0
  %133 = vmatmul.mubr.bf16.gmra.mrb[0].mxu0 %v83
  %v134 = vpop.f32.mrb[0].mxu0
  %v135 = vadd.f32 0.0, %v134
  %v136 = vpop.f32.mrb[0].mxu0
  %v137 = vpop.f32.mrb[0].mxu0
  %v138 = vadd.f32 0.0, %v137
  %v139 = vpop.f32.mrb[0].mxu0
  %140 = vmatprep.mubr.bf16.mxu0 0
  %141 = vmatmul.mubr.bf16.gmra.mrb[0].mxu0 %v86
  %v142 = vpop.f32.mrb[0].mxu0
  %v143 = vadd.f32 0.0, %v142
  %v144 = vpop.f32.mrb[0].mxu0
  %v145 = vpop.f32.mrb[0].mxu0
  %v146 = vadd.f32 0.0, %v145
  %v147 = vpop.f32.mrb[0].mxu0
  %148 = vmatprep.mubr.bf16.mxu0 0
  %149 = vmatmul.mubr.bf16.gmra.mrb[0].mxu0 %v89
  %v150 = vpop.f32.mrb[0].mxu0
  %v151 = vadd.f32 0.0, %v150
  %v152 = vpop.f32.mrb[0].mxu0
  %v153 = vpop.f32.mrb[0].mxu0
  %v154 = vadd.f32 0.0, %v153
  %v155 = vpop.f32.mrb[0].mxu0
  %156 = vmatprep.mubr.bf16.mxu0 0
  %157 = vmatmul.mubr.bf16.gmra.mrb[0].mxu0 %v92
  %v158 = vpop.f32.mrb[0].mxu0
  %v159 = vadd.f32 0.0, %v158
  %v160 = vpop.f32.mrb[0].mxu0
  %v161 = vpop.f32.mrb[0].mxu0
  %v162 = vadd.f32 0.0, %v161
  %v163 = vpop.f32.mrb[0].mxu0
  %164 = vmatprep.mubr.bf16.mxu0 0
  %165 = vmatmul.mubr.bf16.gmra.mrb[0].mxu0 %v95
  %v166 = vpop.f32.mrb[0].mxu0
  %v167 = vadd.f32 0.0, %v166
  %v168 = vpop.f32.mrb[0].mxu0
  %v169 = vpop.f32.mrb[0].mxu0
  %v170 = vadd.f32 0.0, %v169
  %v171 = vpop.f32.mrb[0].mxu0
  %172 = vmatprep.mubr.bf16.mxu0 0
  %173 = vmatmul.mubr.bf16.gmra.mrb[0].mxu0 %v98
  %v174 = vpop.f32.mrb[0].mxu0
  %v175 = vadd.f32 0.0, %v174
  %v176 = vpop.f32.mrb[0].mxu0
  %v177 = vpop.f32.mrb[0].mxu0
  %v178 = vadd.f32 0.0, %v177
  %v179 = vpop.f32.mrb[0].mxu0
  %180 = vdwg.mxu0
  %v181 = vpack.c.bf16 %v138, %v135
  %v182 = vpack.c.bf16 %v146, %v143
  %v185 = vunpack.c.l.b16 %v181
  %v186 = vunpack.c.h.b16 %v181
  %v187 = vunpack.c.l.b16 %v182
  %v188 = vunpack.c.h.b16 %v182
  %v189 = vpack.c.b16 %v185, %v185
  %v190 = vpack.c.b16 %v186, %v186
  %v191 = vpack.c.b16 %v187, %v187
  %v192 = vpack.c.b16 %v188, %v188
  %v197 = vpack.c.bf16 %v154, %v151
  %v198 = vpack.c.bf16 %v162, %v159
  %v201 = vunpack.c.l.b16 %v197
  %v202 = vunpack.c.h.b16 %v197
  %v203 = vunpack.c.l.b16 %v198
  %v204 = vunpack.c.h.b16 %v198
  %v205 = vpack.c.b16 %v201, %v201
  %v206 = vpack.c.b16 %v202, %v202
  %v207 = vpack.c.b16 %v203, %v203
  %v208 = vpack.c.b16 %v204, %v204
  %v209 = vpack.c.bf16 %v170, %v167
  %v210 = vpack.c.bf16 %v178, %v175
  %v213 = vunpack.c.l.b16 %v209
  %v214 = vunpack.c.h.b16 %v209
  %v215 = vunpack.c.l.b16 %v210
  %v216 = vunpack.c.h.b16 %v210
  %v217 = vpack.c.b16 %v213, %v213
  %v218 = vpack.c.b16 %v214, %v214
  %v219 = vpack.c.b16 %v215, %v215
  %v220 = vpack.c.b16 %v216, %v216
  %221 = vxpose.xlu0.c.b16.start [1/8] %v189, 128
  %222 = vxpose.xlu0.c.b16.cont [2/8] 0, 128
  %223 = vxpose.xlu0.c.b16.cont [3/8] 0, 128
  %224 = vxpose.xlu0.c.b16.cont [4/8] 0, 128
  %225 = vxpose.xlu0.c.b16.cont [5/8] 0, 128
  %226 = vxpose.xlu0.c.b16.cont [6/8] 0, 128
  %227 = vxpose.xlu0.c.b16.cont [7/8] 0, 128
  %228 = vxpose.xlu0.c.b16.end [8/8] 0, 128
  %v229 = vpop.trf.xlu0
  %v230 = vpop.trf.xlu0
  %v231 = vpop.trf.xlu0
  %v232 = vpop.trf.xlu0
  %v233 = vpop.trf.xlu0
  %v234 = vpop.trf.xlu0
  %v235 = vpop.trf.xlu0
  %v236 = vpop.trf.xlu0
  %vm237 = vcmask 64512
  %v239 = vsel %vm237, %v229, 0
  %v242 = vsel %vm237, %v230, 0
  %v245 = vsel %vm237, %v231, 0
  %vm247 = vcmask 1043456
  %v249 = vsel %vm247, %v205, 0
  %251 = vmatprep.subr.bf16.mxu0 0
  %252 = vmatpush1.bf16.msra.mxu0 %v249
  %253 = vmatprep.subr.bf16.mxu0 0
  %254 = vmatpush1.bf16.msra.mxu0 0
  %255 = vmatprep.subr.bf16.mxu0 0
  %256 = vmatpush1.bf16.msra.mxu0 0
  %257 = vmatprep.subr.bf16.mxu0 0
  %258 = vmatpush1.bf16.msra.mxu0 0
  %259 = vmatprep.subr.bf16.mxu0 0
  %260 = vmatpush1.bf16.msra.mxu0 0
  %261 = vmatprep.subr.bf16.mxu0 0
  %262 = vmatpush1.bf16.msra.mxu0 0
  %263 = vmatprep.subr.bf16.mxu0 0
  %264 = vmatpush1.bf16.msra.mxu0 0
  %265 = vmatprep.subr.bf16.mxu0 0
  %266 = vmatpush1.bf16.msra.mxu0 0
  %267 = vmatprep.subr.bf16.mxu0 0
  %268 = vmatpush1.bf16.msra.mxu0 0
  %269 = vmatprep.subr.bf16.mxu0 0
  %270 = vmatpush1.bf16.msra.mxu0 0
  %271 = vmatprep.subr.bf16.mxu0 0
  %272 = vmatpush1.bf16.msra.mxu0 0
  %273 = vmatprep.subr.bf16.mxu0 0
  %274 = vmatpush1.bf16.msra.mxu0 0
  %275 = vmatprep.subr.bf16.mxu0 0
  %276 = vmatpush1.bf16.msra.mxu0 0
  %277 = vmatprep.subr.bf16.mxu0 0
  %278 = vmatpush1.bf16.msra.mxu0 0
  %279 = vmatprep.subr.bf16.mxu0 0
  %280 = vmatpush1.bf16.msra.mxu0 0
  %281 = vmatprep.subr.bf16.mxu0 0
  %282 = vmatpush1.bf16.msra.mxu0 0
  %283 = vmatprep.mubr.bf16.mxu0 0
  %284 = vmatmul.mubr.bf16.gmra.mrb[0].mxu0 %v239
  %v285 = vpop.f32.mrb[0].mxu0
  %v286 = vadd.f32 0.0, %v285
  %v287 = vpop.f32.mrb[0].mxu0
  %v288 = vpop.f32.mrb[0].mxu0
  %v289 = vadd.f32 0.0, %v288
  %v290 = vpop.f32.mrb[0].mxu0
  %291 = vmatprep.mubr.bf16.mxu0 0
  %292 = vmatmul.mubr.bf16.gmra.mrb[0].mxu0 %v242
  %v293 = vpop.f32.mrb[0].mxu0
  %v294 = vadd.f32 0.0, %v293
  %v295 = vpop.f32.mrb[0].mxu0
  %v296 = vpop.f32.mrb[0].mxu0
  %v297 = vadd.f32 0.0, %v296
  %v298 = vpop.f32.mrb[0].mxu0
  %299 = vmatprep.mubr.bf16.mxu0 0
  %300 = vmatmul.mubr.bf16.gmra.mrb[0].mxu0 %v245
  %v301 = vpop.f32.mrb[0].mxu0
  %v302 = vadd.f32 0.0, %v301
  %v303 = vpop.f32.mrb[0].mxu0
  %v304 = vpop.f32.mrb[0].mxu0
  %v305 = vpop.f32.mrb[0].mxu0
  %306 = vdwg.mxu0
  %307 = vxpose.xlu0.c.b16.start [1/8] %v190, 128
  %308 = vxpose.xlu0.c.b16.cont [2/8] 0, 128
  %309 = vxpose.xlu0.c.b16.cont [3/8] 0, 128
  %310 = vxpose.xlu0.c.b16.cont [4/8] 0, 128
  %311 = vxpose.xlu0.c.b16.cont [5/8] 0, 128
  %312 = vxpose.xlu0.c.b16.cont [6/8] 0, 128
  %313 = vxpose.xlu0.c.b16.cont [7/8] 0, 128
  %314 = vxpose.xlu0.c.b16.end [8/8] 0, 128
  %v315 = vpop.trf.xlu0
  %v316 = vpop.trf.xlu0
  %v317 = vpop.trf.xlu0
  %v318 = vpop.trf.xlu0
  %v319 = vpop.trf.xlu0
  %v320 = vpop.trf.xlu0
  %v321 = vpop.trf.xlu0
  %v322 = vpop.trf.xlu0
  %v324 = vsel %vm237, %v315, 0
  %v327 = vsel %vm237, %v316, 0
  %v330 = vsel %vm237, %v317, 0
  %v333 = vsel %vm247, %v206, 0
  %335 = vmatprep.subr.bf16.mxu0 0
  %336 = vmatpush1.bf16.msra.mxu0 %v333
  %337 = vmatprep.subr.bf16.mxu0 0
  %338 = vmatpush1.bf16.msra.mxu0 0
  %339 = vmatprep.subr.bf16.mxu0 0
  %340 = vmatpush1.bf16.msra.mxu0 0
  %341 = vmatprep.subr.bf16.mxu0 0
  %342 = vmatpush1.bf16.msra.mxu0 0
  %343 = vmatprep.subr.bf16.mxu0 0
  %344 = vmatpush1.bf16.msra.mxu0 0
  %345 = vmatprep.subr.bf16.mxu0 0
  %346 = vmatpush1.bf16.msra.mxu0 0
  %347 = vmatprep.subr.bf16.mxu0 0
  %348 = vmatpush1.bf16.msra.mxu0 0
  %349 = vmatprep.subr.bf16.mxu0 0
  %350 = vmatpush1.bf16.msra.mxu0 0
  %351 = vmatprep.subr.bf16.mxu0 0
  %352 = vmatpush1.bf16.msra.mxu0 0
  %353 = vmatprep.subr.bf16.mxu0 0
  %354 = vmatpush1.bf16.msra.mxu0 0
  %355 = vmatprep.subr.bf16.mxu0 0
  %356 = vmatpush1.bf16.msra.mxu0 0
  %357 = vmatprep.subr.bf16.mxu0 0
  %358 = vmatpush1.bf16.msra.mxu0 0
  %359 = vmatprep.subr.bf16.mxu0 0
  %360 = vmatpush1.bf16.msra.mxu0 0
  %361 = vmatprep.subr.bf16.mxu0 0
  %362 = vmatpush1.bf16.msra.mxu0 0
  %363 = vmatprep.subr.bf16.mxu0 0
  %364 = vmatpush1.bf16.msra.mxu0 0
  %365 = vmatprep.subr.bf16.mxu0 0
  %366 = vmatpush1.bf16.msra.mxu0 0
  %367 = vmatprep.mubr.bf16.mxu0 0
  %368 = vmatmul.mubr.bf16.gmra.mrb[0].mxu0 %v324
  %v369 = vpop.f32.mrb[0].mxu0
  %v370 = vadd.f32 0.0, %v369
  %v371 = vpop.f32.mrb[0].mxu0
  %v372 = vpop.f32.mrb[0].mxu0
  %v373 = vadd.f32 0.0, %v372
  %v374 = vpop.f32.mrb[0].mxu0
  %375 = vmatprep.mubr.bf16.mxu0 0
  %376 = vmatmul.mubr.bf16.gmra.mrb[0].mxu0 %v327
  %v377 = vpop.f32.mrb[0].mxu0
  %v378 = vadd.f32 0.0, %v377
  %v379 = vpop.f32.mrb[0].mxu0
  %v380 = vpop.f32.mrb[0].mxu0
  %v381 = vadd.f32 0.0, %v380
  %v382 = vpop.f32.mrb[0].mxu0
  %383 = vmatprep.mubr.bf16.mxu0 0
  %384 = vmatmul.mubr.bf16.gmra.mrb[0].mxu0 %v330
  %v385 = vpop.f32.mrb[0].mxu0
  %v386 = vadd.f32 0.0, %v385
  %v387 = vpop.f32.mrb[0].mxu0
  %v388 = vpop.f32.mrb[0].mxu0
  %v389 = vpop.f32.mrb[0].mxu0
  %390 = vdwg.mxu0
  %391 = vxpose.xlu0.c.b16.start [1/8] %v191, 128
  %392 = vxpose.xlu0.c.b16.cont [2/8] 0, 128
  %393 = vxpose.xlu0.c.b16.cont [3/8] 0, 128
  %394 = vxpose.xlu0.c.b16.cont [4/8] 0, 128
  %395 = vxpose.xlu0.c.b16.cont [5/8] 0, 128
  %396 = vxpose.xlu0.c.b16.cont [6/8] 0, 128
  %397 = vxpose.xlu0.c.b16.cont [7/8] 0, 128
  %398 = vxpose.xlu0.c.b16.end [8/8] 0, 128
  %v399 = vpop.trf.xlu0
  %v400 = vpop.trf.xlu0
  %v401 = vpop.trf.xlu0
  %v402 = vpop.trf.xlu0
  %v403 = vpop.trf.xlu0
  %v404 = vpop.trf.xlu0
  %v405 = vpop.trf.xlu0
  %v406 = vpop.trf.xlu0
  %v408 = vsel %vm237, %v399, 0
  %v411 = vsel %vm237, %v400, 0
  %v414 = vsel %vm237, %v401, 0
  %v417 = vsel %vm247, %v207, 0
  %419 = vmatprep.subr.bf16.mxu0 0
  %420 = vmatpush1.bf16.msra.mxu0 %v417
  %421 = vmatprep.subr.bf16.mxu0 0
  %422 = vmatpush1.bf16.msra.mxu0 0
  %423 = vmatprep.subr.bf16.mxu0 0
  %424 = vmatpush1.bf16.msra.mxu0 0
  %425 = vmatprep.subr.bf16.mxu0 0
  %426 = vmatpush1.bf16.msra.mxu0 0
  %427 = vmatprep.subr.bf16.mxu0 0
  %428 = vmatpush1.bf16.msra.mxu0 0
  %429 = vmatprep.subr.bf16.mxu0 0
  %430 = vmatpush1.bf16.msra.mxu0 0
  %431 = vmatprep.subr.bf16.mxu0 0
  %432 = vmatpush1.bf16.msra.mxu0 0
  %433 = vmatprep.subr.bf16.mxu0 0
  %434 = vmatpush1.bf16.msra.mxu0 0
  %435 = vmatprep.subr.bf16.mxu0 0
  %436 = vmatpush1.bf16.msra.mxu0 0
  %437 = vmatprep.subr.bf16.mxu0 0
  %438 = vmatpush1.bf16.msra.mxu0 0
  %439 = vmatprep.subr.bf16.mxu0 0
  %440 = vmatpush1.bf16.msra.mxu0 0
  %441 = vmatprep.subr.bf16.mxu0 0
  %442 = vmatpush1.bf16.msra.mxu0 0
  %443 = vmatprep.subr.bf16.mxu0 0
  %444 = vmatpush1.bf16.msra.mxu0 0
  %445 = vmatprep.subr.bf16.mxu0 0
  %446 = vmatpush1.bf16.msra.mxu0 0
  %447 = vmatprep.subr.bf16.mxu0 0
  %448 = vmatpush1.bf16.msra.mxu0 0
  %449 = vmatprep.subr.bf16.mxu0 0
  %450 = vmatpush1.bf16.msra.mxu0 0
  %451 = vmatprep.mubr.bf16.mxu0 0
  %452 = vmatmul.mubr.bf16.gmra.mrb[0].mxu0 %v408
  %v453 = vpop.f32.mrb[0].mxu0
  %v454 = vadd.f32 0.0, %v453
  %v455 = vpop.f32.mrb[0].mxu0
  %v456 = vpop.f32.mrb[0].mxu0
  %v457 = vadd.f32 0.0, %v456
  %v458 = vpop.f32.mrb[0].mxu0
  %459 = vmatprep.mubr.bf16.mxu0 0
  %460 = vmatmul.mubr.bf16.gmra.mrb[0].mxu0 %v411
  %v461 = vpop.f32.mrb[0].mxu0
  %v462 = vadd.f32 0.0, %v461
  %v463 = vpop.f32.mrb[0].mxu0
  %v464 = vpop.f32.mrb[0].mxu0
  %v465 = vadd.f32 0.0, %v464
  %v466 = vpop.f32.mrb[0].mxu0
  %467 = vmatprep.mubr.bf16.mxu0 0
  %468 = vmatmul.mubr.bf16.gmra.mrb[0].mxu0 %v414
  %v469 = vpop.f32.mrb[0].mxu0
  %v470 = vadd.f32 0.0, %v469
  %v471 = vpop.f32.mrb[0].mxu0
  %v472 = vpop.f32.mrb[0].mxu0
  %v473 = vpop.f32.mrb[0].mxu0
  %474 = vdwg.mxu0
  %475 = vxpose.xlu0.c.b16.start [1/8] %v192, 128
  %476 = vxpose.xlu0.c.b16.cont [2/8] 0, 128
  %477 = vxpose.xlu0.c.b16.cont [3/8] 0, 128
  %478 = vxpose.xlu0.c.b16.cont [4/8] 0, 128
  %479 = vxpose.xlu0.c.b16.cont [5/8] 0, 128
  %480 = vxpose.xlu0.c.b16.cont [6/8] 0, 128
  %481 = vxpose.xlu0.c.b16.cont [7/8] 0, 128
  %482 = vxpose.xlu0.c.b16.end [8/8] 0, 128
  %v483 = vpop.trf.xlu0
  %v484 = vpop.trf.xlu0
  %v485 = vpop.trf.xlu0
  %v486 = vpop.trf.xlu0
  %v487 = vpop.trf.xlu0
  %v488 = vpop.trf.xlu0
  %v489 = vpop.trf.xlu0
  %v490 = vpop.trf.xlu0
  %v492 = vsel %vm237, %v483, 0
  %v495 = vsel %vm237, %v484, 0
  %v498 = vsel %vm237, %v485, 0
  %v501 = vsel %vm247, %v208, 0
  %503 = vmatprep.subr.bf16.mxu0 0
  %504 = vmatpush1.bf16.msra.mxu0 %v501
  %505 = vmatprep.subr.bf16.mxu0 0
  %506 = vmatpush1.bf16.msra.mxu0 0
  %507 = vmatprep.subr.bf16.mxu0 0
  %508 = vmatpush1.bf16.msra.mxu0 0
  %509 = vmatprep.subr.bf16.mxu0 0
  %510 = vmatpush1.bf16.msra.mxu0 0
  %511 = vmatprep.subr.bf16.mxu0 0
  %512 = vmatpush1.bf16.msra.mxu0 0
  %513 = vmatprep.subr.bf16.mxu0 0
  %514 = vmatpush1.bf16.msra.mxu0 0
  %515 = vmatprep.subr.bf16.mxu0 0
  %516 = vmatpush1.bf16.msra.mxu0 0
  %517 = vmatprep.subr.bf16.mxu0 0
  %518 = vmatpush1.bf16.msra.mxu0 0
  %519 = vmatprep.subr.bf16.mxu0 0
  %520 = vmatpush1.bf16.msra.mxu0 0
  %521 = vmatprep.subr.bf16.mxu0 0
  %522 = vmatpush1.bf16.msra.mxu0 0
  %523 = vmatprep.subr.bf16.mxu0 0
  %524 = vmatpush1.bf16.msra.mxu0 0
  %525 = vmatprep.subr.bf16.mxu0 0
  %526 = vmatpush1.bf16.msra.mxu0 0
  %527 = vmatprep.subr.bf16.mxu0 0
  %528 = vmatpush1.bf16.msra.mxu0 0
  %529 = vmatprep.subr.bf16.mxu0 0
  %530 = vmatpush1.bf16.msra.mxu0 0
  %531 = vmatprep.subr.bf16.mxu0 0
  %532 = vmatpush1.bf16.msra.mxu0 0
  %533 = vmatprep.subr.bf16.mxu0 0
  %534 = vmatpush1.bf16.msra.mxu0 0
  %535 = vmatprep.mubr.bf16.mxu0 0
  %536 = vmatmul.mubr.bf16.gmra.mrb[0].mxu0 %v492
  %v537 = vpop.f32.mrb[0].mxu0
  %v538 = vadd.f32 0.0, %v537
  %v539 = vpop.f32.mrb[0].mxu0
  %v540 = vpop.f32.mrb[0].mxu0
  %v541 = vadd.f32 0.0, %v540
  %v542 = vpop.f32.mrb[0].mxu0
  %543 = vmatprep.mubr.bf16.mxu0 0
  %544 = vmatmul.mubr.bf16.gmra.mrb[0].mxu0 %v495
  %v545 = vpop.f32.mrb[0].mxu0
  %v546 = vadd.f32 0.0, %v545
  %v547 = vpop.f32.mrb[0].mxu0
  %v548 = vpop.f32.mrb[0].mxu0
  %v549 = vadd.f32 0.0, %v548
  %v550 = vpop.f32.mrb[0].mxu0
  %551 = vmatprep.mubr.bf16.mxu0 0
  %552 = vmatmul.mubr.bf16.gmra.mrb[0].mxu0 %v498
  %v553 = vpop.f32.mrb[0].mxu0
  %v554 = vadd.f32 0.0, %v553
  %v555 = vpop.f32.mrb[0].mxu0
  %v556 = vpop.f32.mrb[0].mxu0
  %v557 = vpop.f32.mrb[0].mxu0
  %558 = vdwg.mxu0
  %vm559 = vcmask 269312
  %v560 = vsel %vm559, %v286, -inf
  %561 = vmax.xlane.f32.xlu0 %v560
  %v562 = vpop.xlane.xlu0 %561
  %v563 = vsel %vm559, %v289, -inf
  %564 = vmax.xlane.f32.xlu0 %v563
  %v565 = vpop.xlane.xlu0 %564
  %v566 = vsel %vm559, %v294, -inf
  %567 = vmax.xlane.f32.xlu0 %v566
  %v568 = vpop.xlane.xlu0 %567
  %v569 = vsel %vm559, %v297, -inf
  %570 = vmax.xlane.f32.xlu0 %v569
  %v571 = vpop.xlane.xlu0 %570
  %vm572 = vcmask 262144
  %v573 = vsel %vm572, %v302, -inf
  %574 = vmax.xlane.f32.xlu0 %v573
  %v575 = vpop.xlane.xlu0 %574
  %v576 = vsel %vm559, %v370, -inf
  %577 = vmax.xlane.f32.xlu0 %v576
  %v578 = vpop.xlane.xlu0 %577
  %v579 = vsel %vm559, %v373, -inf
  %580 = vmax.xlane.f32.xlu0 %v579
  %v581 = vpop.xlane.xlu0 %580
  %v582 = vsel %vm559, %v378, -inf
  %583 = vmax.xlane.f32.xlu0 %v582
  %v584 = vpop.xlane.xlu0 %583
  %v585 = vsel %vm559, %v381, -inf
  %586 = vmax.xlane.f32.xlu0 %v585
  %v587 = vpop.xlane.xlu0 %586
  %v588 = vsel %vm572, %v386, -inf
  %589 = vmax.xlane.f32.xlu0 %v588
  %v590 = vpop.xlane.xlu0 %589
  %v591 = vsel %vm559, %v454, -inf
  %592 = vmax.xlane.f32.xlu0 %v591
  %v593 = vpop.xlane.xlu0 %592
  %v594 = vsel %vm559, %v457, -inf
  %595 = vmax.xlane.f32.xlu0 %v594
  %v596 = vpop.xlane.xlu0 %595
  %v597 = vsel %vm559, %v462, -inf
  %598 = vmax.xlane.f32.xlu0 %v597
  %v599 = vpop.xlane.xlu0 %598
  %v600 = vsel %vm559, %v465, -inf
  %601 = vmax.xlane.f32.xlu0 %v600
  %v602 = vpop.xlane.xlu0 %601
  %v603 = vsel %vm572, %v470, -inf
  %604 = vmax.xlane.f32.xlu0 %v603
  %v605 = vpop.xlane.xlu0 %604
  %v606 = vsel %vm559, %v538, -inf
  %607 = vmax.xlane.f32.xlu0 %v606
  %v608 = vpop.xlane.xlu0 %607
  %v609 = vsel %vm559, %v541, -inf
  %610 = vmax.xlane.f32.xlu0 %v609
  %v611 = vpop.xlane.xlu0 %610
  %v612 = vsel %vm559, %v546, -inf
  %613 = vmax.xlane.f32.xlu0 %v612
  %v614 = vpop.xlane.xlu0 %613
  %v615 = vsel %vm559, %v549, -inf
  %616 = vmax.xlane.f32.xlu0 %v615
  %v617 = vpop.xlane.xlu0 %616
  %v618 = vsel %vm572, %v554, -inf
  %619 = vmax.xlane.f32.xlu0 %v618
  %v620 = vpop.xlane.xlu0 %619
  %v621 = vsub.f32 %v286, %v562
  %v622 = vsub.f32 %v289, %v565
  %v623 = vsub.f32 %v294, %v568
  %v624 = vsub.f32 %v297, %v571
  %v625 = vsub.f32 %v302, %v575
  %v626 = vsub.f32 %v370, %v578
  %v627 = vsub.f32 %v373, %v581
  %v628 = vsub.f32 %v378, %v584
  %v629 = vsub.f32 %v381, %v587
  %v630 = vsub.f32 %v386, %v590
  %v631 = vsub.f32 %v454, %v593
  %v632 = vsub.f32 %v457, %v596
  %v633 = vsub.f32 %v462, %v599
  %v634 = vsub.f32 %v465, %v602
  %v635 = vsub.f32 %v470, %v605
  %v636 = vsub.f32 %v538, %v608
  %v637 = vsub.f32 %v541, %v611
  %v638 = vsub.f32 %v546, %v614
  %v639 = vsub.f32 %v549, %v617
  %v640 = vsub.f32 %v554, %v620
  %v641 = vmul.f32 %v621, 1.442695
  %v642 = vpow.pop %v641
  %v643 = vmul.f32 %v622, 1.442695
  %v644 = vpow.pop %v643
  %v645 = vmul.f32 %v623, 1.442695
  %v646 = vpow.pop %v645
  %v647 = vmul.f32 %v624, 1.442695
  %v648 = vpow.pop %v647
  %v649 = vmul.f32 %v625, 1.442695
  %v650 = vpow.pop %v649
  %v651 = vmul.f32 %v626, 1.442695
  %v652 = vpow.pop %v651
  %v653 = vmul.f32 %v627, 1.442695
  %v654 = vpow.pop %v653
  %v655 = vmul.f32 %v628, 1.442695
  %v656 = vpow.pop %v655
  %v657 = vmul.f32 %v629, 1.442695
  %v658 = vpow.pop %v657
  %v659 = vmul.f32 %v630, 1.442695
  %v660 = vpow.pop %v659
  %v661 = vmul.f32 %v631, 1.442695
  %v662 = vpow.pop %v661
  %v663 = vmul.f32 %v632, 1.442695
  %v664 = vpow.pop %v663
  %v665 = vmul.f32 %v633, 1.442695
  %v666 = vpow.pop %v665
  %v667 = vmul.f32 %v634, 1.442695
  %v668 = vpow.pop %v667
  %v669 = vmul.f32 %v635, 1.442695
  %v670 = vpow.pop %v669
  %v671 = vmul.f32 %v636, 1.442695
  %v672 = vpow.pop %v671
  %v673 = vmul.f32 %v637, 1.442695
  %v674 = vpow.pop %v673
  %v675 = vmul.f32 %v638, 1.442695
  %v676 = vpow.pop %v675
  %v677 = vmul.f32 %v639, 1.442695
  %v678 = vpow.pop %v677
  %v679 = vmul.f32 %v640, 1.442695
  %v680 = vpow.pop %v679
  %v681 = vsel %vm559, %v642, 0.0
  %682 = vadd.xlane.f32.xlu0 %v681
  %v683 = vpop.xlane.xlu0 %682
  %v684 = vsel %vm559, %v644, 0.0
  %685 = vadd.xlane.f32.xlu0 %v684
  %v686 = vpop.xlane.xlu0 %685
  %v687 = vsel %vm559, %v646, 0.0
  %688 = vadd.xlane.f32.xlu0 %v687
  %v689 = vpop.xlane.xlu0 %688
  %v690 = vsel %vm559, %v648, 0.0
  %691 = vadd.xlane.f32.xlu0 %v690
  %v692 = vpop.xlane.xlu0 %691
  %v693 = vsel %vm572, %v650, 0.0
  %694 = vadd.xlane.f32.xlu0 %v693
  %v695 = vpop.xlane.xlu0 %694
  %v696 = vsel %vm559, %v652, 0.0
  %697 = vadd.xlane.f32.xlu0 %v696
  %v698 = vpop.xlane.xlu0 %697
  %v699 = vsel %vm559, %v654, 0.0
  %700 = vadd.xlane.f32.xlu0 %v699
  %v701 = vpop.xlane.xlu0 %700
  %v702 = vsel %vm559, %v656, 0.0
  %703 = vadd.xlane.f32.xlu0 %v702
  %v704 = vpop.xlane.xlu0 %703
  %v705 = vsel %vm559, %v658, 0.0
  %706 = vadd.xlane.f32.xlu0 %v705
  %v707 = vpop.xlane.xlu0 %706
  %v708 = vsel %vm572, %v660, 0.0
  %709 = vadd.xlane.f32.xlu0 %v708
  %v710 = vpop.xlane.xlu0 %709
  %v711 = vsel %vm559, %v662, 0.0
  %712 = vadd.xlane.f32.xlu0 %v711
  %v713 = vpop.xlane.xlu0 %712
  %v714 = vsel %vm559, %v664, 0.0
  %715 = vadd.xlane.f32.xlu0 %v714
  %v716 = vpop.xlane.xlu0 %715
  %v717 = vsel %vm559, %v666, 0.0
  %718 = vadd.xlane.f32.xlu0 %v717
  %v719 = vpop.xlane.xlu0 %718
  %v720 = vsel %vm559, %v668, 0.0
  %721 = vadd.xlane.f32.xlu0 %v720
  %v722 = vpop.xlane.xlu0 %721
  %v723 = vsel %vm572, %v670, 0.0
  %724 = vadd.xlane.f32.xlu0 %v723
  %v725 = vpop.xlane.xlu0 %724
  %v726 = vsel %vm559, %v672, 0.0
  %727 = vadd.xlane.f32.xlu0 %v726
  %v728 = vpop.xlane.xlu0 %727
  %v729 = vsel %vm559, %v674, 0.0
  %730 = vadd.xlane.f32.xlu0 %v729
  %v731 = vpop.xlane.xlu0 %730
  %v732 = vsel %vm559, %v676, 0.0
  %733 = vadd.xlane.f32.xlu0 %v732
  %v734 = vpop.xlane.xlu0 %733
  %v735 = vsel %vm559, %v678, 0.0
  %736 = vadd.xlane.f32.xlu0 %v735
  %v737 = vpop.xlane.xlu0 %736
  %v738 = vsel %vm572, %v680, 0.0
  %739 = vadd.xlane.f32.xlu0 %v738
  %v740 = vpop.xlane.xlu0 %739
  %v741 = vrcp.pop %v683
  %v742 = vrcp.pop %v686
  %v743 = vrcp.pop %v689
  %v744 = vrcp.pop %v692
  %v745 = vrcp.pop %v695
  %v746 = vrcp.pop %v698
  %v747 = vrcp.pop %v701
  %v748 = vrcp.pop %v704
  %v749 = vrcp.pop %v707
  %v750 = vrcp.pop %v710
  %v751 = vrcp.pop %v713
  %v752 = vrcp.pop %v716
  %v753 = vrcp.pop %v719
  %v754 = vrcp.pop %v722
  %v755 = vrcp.pop %v725
  %v756 = vrcp.pop %v728
  %v757 = vrcp.pop %v731
  %v758 = vrcp.pop %v734
  %v759 = vrcp.pop %v737
  %v760 = vrcp.pop %v740
  %v761 = vmul.f32 %v642, %v741
  %v762 = vmul.f32 %v644, %v742
  %v763 = vmul.f32 %v646, %v743
  %v764 = vmul.f32 %v648, %v744
  %v765 = vmul.f32 %v650, %v745
  %v766 = vmul.f32 %v652, %v746
  %v767 = vmul.f32 %v654, %v747
  %v768 = vmul.f32 %v656, %v748
  %v769 = vmul.f32 %v658, %v749
  %v770 = vmul.f32 %v660, %v750
  %v771 = vmul.f32 %v662, %v751
  %v772 = vmul.f32 %v664, %v752
  %v773 = vmul.f32 %v666, %v753
  %v774 = vmul.f32 %v668, %v754
  %v775 = vmul.f32 %v670, %v755
  %v776 = vmul.f32 %v672, %v756
  %v777 = vmul.f32 %v674, %v757
  %v778 = vmul.f32 %v676, %v758
  %v779 = vmul.f32 %v678, %v759
  %v780 = vmul.f32 %v680, %v760
  %v781 = vpack.c.bf16 %v762, %v761
  %v782 = vpack.c.bf16 %v764, %v763
  %v783 = vpack.c.bf16 %v765, %v765
  %v784 = vpack.c.bf16 %v767, %v766
  %v785 = vpack.c.bf16 %v769, %v768
  %v786 = vpack.c.bf16 %v770, %v770
  %v787 = vpack.c.bf16 %v772, %v771
  %v788 = vpack.c.bf16 %v774, %v773
  %v789 = vpack.c.bf16 %v775, %v775
  %v790 = vpack.c.bf16 %v777, %v776
  %v791 = vpack.c.bf16 %v779, %v778
  %v792 = vpack.c.bf16 %v780, %v780
  %v794 = vsel %vm559, %v217, 0
  %v797 = vsel %vm559, %v781, 0
  %v800 = vsel %vm559, %v782, 0
  %v803 = vsel %vm559, %v783, 0
  %805 = vmatprep.subr.bf16.mxu0 0
  %806 = vmatpush1.bf16.xpose.msra.mxu0 %v797
  %807 = vmatprep.subr.bf16.mxu0 0
  %808 = vmatpush1.bf16.xpose.msra.mxu0 %v800
  %809 = vmatprep.subr.bf16.mxu0 0
  %810 = vmatpush1.bf16.xpose.msra.mxu0 %v803
  %811 = vmatprep.subr.bf16.mxu0 0
  %812 = vmatpush1.bf16.xpose.msra.mxu0 0
  %813 = vmatprep.subr.bf16.mxu0 0
  %814 = vmatpush1.bf16.xpose.msra.mxu0 0
  %815 = vmatprep.subr.bf16.mxu0 0
  %816 = vmatpush1.bf16.xpose.msra.mxu0 0
  %817 = vmatprep.subr.bf16.mxu0 0
  %818 = vmatpush1.bf16.xpose.msra.mxu0 0
  %819 = vmatprep.subr.bf16.mxu0 0
  %820 = vmatpush1.bf16.xpose.msra.mxu0 0
  %821 = vmatprep.subr.bf16.mxu0 0
  %822 = vmatpush1.bf16.xpose.msra.mxu0 0
  %823 = vmatprep.subr.bf16.mxu0 0
  %824 = vmatpush1.bf16.xpose.msra.mxu0 0
  %825 = vmatprep.subr.bf16.mxu0 0
  %826 = vmatpush1.bf16.xpose.msra.mxu0 0
  %827 = vmatprep.subr.bf16.mxu0 0
  %828 = vmatpush1.bf16.xpose.msra.mxu0 0
  %829 = vmatprep.subr.bf16.mxu0 0
  %830 = vmatpush1.bf16.xpose.msra.mxu0 0
  %831 = vmatprep.subr.bf16.mxu0 0
  %832 = vmatpush1.bf16.xpose.msra.mxu0 0
  %833 = vmatprep.subr.bf16.mxu0 0
  %834 = vmatpush1.bf16.xpose.msra.mxu0 0
  %835 = vmatprep.subr.bf16.mxu0 0
  %836 = vmatpush1.bf16.xpose.msra.mxu0 0
  %837 = vmatprep.mubr.bf16.mxu0 0
  %838 = vmatmul.mubr.bf16.gmra.mrb[0].mxu0 %v794
  %v839 = vpop.f32.mrb[0].mxu0
  %v840 = vadd.f32 0.0, %v839
  %v841 = vpop.f32.mrb[0].mxu0
  %v842 = vpop.f32.mrb[0].mxu0
  %v843 = vpop.f32.mrb[0].mxu0
  %844 = vdwg.mxu0
  %v846 = vsel %vm559, %v218, 0
  %v849 = vsel %vm559, %v784, 0
  %v852 = vsel %vm559, %v785, 0
  %v855 = vsel %vm559, %v786, 0
  %857 = vmatprep.subr.bf16.mxu0 0
  %858 = vmatpush1.bf16.xpose.msra.mxu0 %v849
  %859 = vmatprep.subr.bf16.mxu0 0
  %860 = vmatpush1.bf16.xpose.msra.mxu0 %v852
  %861 = vmatprep.subr.bf16.mxu0 0
  %862 = vmatpush1.bf16.xpose.msra.mxu0 %v855
  %863 = vmatprep.subr.bf16.mxu0 0
  %864 = vmatpush1.bf16.xpose.msra.mxu0 0
  %865 = vmatprep.subr.bf16.mxu0 0
  %866 = vmatpush1.bf16.xpose.msra.mxu0 0
  %867 = vmatprep.subr.bf16.mxu0 0
  %868 = vmatpush1.bf16.xpose.msra.mxu0 0
  %869 = vmatprep.subr.bf16.mxu0 0
  %870 = vmatpush1.bf16.xpose.msra.mxu0 0
  %871 = vmatprep.subr.bf16.mxu0 0
  %872 = vmatpush1.bf16.xpose.msra.mxu0 0
  %873 = vmatprep.subr.bf16.mxu0 0
  %874 = vmatpush1.bf16.xpose.msra.mxu0 0
  %875 = vmatprep.subr.bf16.mxu0 0
  %876 = vmatpush1.bf16.xpose.msra.mxu0 0
  %877 = vmatprep.subr.bf16.mxu0 0
  %878 = vmatpush1.bf16.xpose.msra.mxu0 0
  %879 = vmatprep.subr.bf16.mxu0 0
  %880 = vmatpush1.bf16.xpose.msra.mxu0 0
  %881 = vmatprep.subr.bf16.mxu0 0
  %882 = vmatpush1.bf16.xpose.msra.mxu0 0
  %883 = vmatprep.subr.bf16.mxu0 0
  %884 = vmatpush1.bf16.xpose.msra.mxu0 0
  %885 = vmatprep.subr.bf16.mxu0 0
  %886 = vmatpush1.bf16.xpose.msra.mxu0 0
  %887 = vmatprep.subr.bf16.mxu0 0
  %888 = vmatpush1.bf16.xpose.msra.mxu0 0
  %889 = vmatprep.mubr.bf16.mxu0 0
  %890 = vmatmul.mubr.bf16.gmra.mrb[0].mxu0 %v846
  %v891 = vpop.f32.mrb[0].mxu0
  %v892 = vadd.f32 0.0, %v891
  %v893 = vpop.f32.mrb[0].mxu0
  %v894 = vpop.f32.mrb[0].mxu0
  %v895 = vpop.f32.mrb[0].mxu0
  %896 = vdwg.mxu0
  %v898 = vsel %vm559, %v219, 0
  %v901 = vsel %vm559, %v787, 0
  %v904 = vsel %vm559, %v788, 0
  %v907 = vsel %vm559, %v789, 0
  %909 = vmatprep.subr.bf16.mxu0 0
  %910 = vmatpush1.bf16.xpose.msra.mxu0 %v901
  %911 = vmatprep.subr.bf16.mxu0 0
  %912 = vmatpush1.bf16.xpose.msra.mxu0 %v904
  %913 = vmatprep.subr.bf16.mxu0 0
  %914 = vmatpush1.bf16.xpose.msra.mxu0 %v907
  %915 = vmatprep.subr.bf16.mxu0 0
  %916 = vmatpush1.bf16.xpose.msra.mxu0 0
  %917 = vmatprep.subr.bf16.mxu0 0
  %918 = vmatpush1.bf16.xpose.msra.mxu0 0
  %919 = vmatprep.subr.bf16.mxu0 0
  %920 = vmatpush1.bf16.xpose.msra.mxu0 0
  %921 = vmatprep.subr.bf16.mxu0 0
  %922 = vmatpush1.bf16.xpose.msra.mxu0 0
  %923 = vmatprep.subr.bf16.mxu0 0
  %924 = vmatpush1.bf16.xpose.msra.mxu0 0
  %925 = vmatprep.subr.bf16.mxu0 0
  %926 = vmatpush1.bf16.xpose.msra.mxu0 0
  %927 = vmatprep.subr.bf16.mxu0 0
  %928 = vmatpush1.bf16.xpose.msra.mxu0 0
  %929 = vmatprep.subr.bf16.mxu0 0
  %930 = vmatpush1.bf16.xpose.msra.mxu0 0
  %931 = vmatprep.subr.bf16.mxu0 0
  %932 = vmatpush1.bf16.xpose.msra.mxu0 0
  %933 = vmatprep.subr.bf16.mxu0 0
  %934 = vmatpush1.bf16.xpose.msra.mxu0 0
  %935 = vmatprep.subr.bf16.mxu0 0
  %936 = vmatpush1.bf16.xpose.msra.mxu0 0
  %937 = vmatprep.subr.bf16.mxu0 0
  %938 = vmatpush1.bf16.xpose.msra.mxu0 0
  %939 = vmatprep.subr.bf16.mxu0 0
  %940 = vmatpush1.bf16.xpose.msra.mxu0 0
  %941 = vmatprep.mubr.bf16.mxu0 0
  %942 = vmatmul.mubr.bf16.gmra.mrb[0].mxu0 %v898
  %v943 = vpop.f32.mrb[0].mxu0
  %v944 = vadd.f32 0.0, %v943
  %v945 = vpop.f32.mrb[0].mxu0
  %v946 = vpop.f32.mrb[0].mxu0
  %v947 = vpop.f32.mrb[0].mxu0
  %948 = vdwg.mxu0
  %v950 = vsel %vm559, %v220, 0
  %v953 = vsel %vm559, %v790, 0
  %v956 = vsel %vm559, %v791, 0
  %v959 = vsel %vm559, %v792, 0
  %961 = vmatprep.subr.bf16.mxu0 0
  %962 = vmatpush1.bf16.xpose.msra.mxu0 %v953
  %963 = vmatprep.subr.bf16.mxu0 0
  %964 = vmatpush1.bf16.xpose.msra.mxu0 %v956
  %965 = vmatprep.subr.bf16.mxu0 0
  %966 = vmatpush1.bf16.xpose.msra.mxu0 %v959
  %967 = vmatprep.subr.bf16.mxu0 0
  %968 = vmatpush1.bf16.xpose.msra.mxu0 0
  %969 = vmatprep.subr.bf16.mxu0 0
  %970 = vmatpush1.bf16.xpose.msra.mxu0 0
  %971 = vmatprep.subr.bf16.mxu0 0
  %972 = vmatpush1.bf16.xpose.msra.mxu0 0
  %973 = vmatprep.subr.bf16.mxu0 0
  %974 = vmatpush1.bf16.xpose.msra.mxu0 0
  %975 = vmatprep.subr.bf16.mxu0 0
  %976 = vmatpush1.bf16.xpose.msra.mxu0 0
  %977 = vmatprep.subr.bf16.mxu0 0
  %978 = vmatpush1.bf16.xpose.msra.mxu0 0
  %979 = vmatprep.subr.bf16.mxu0 0
  %980 = vmatpush1.bf16.xpose.msra.mxu0 0
  %981 = vmatprep.subr.bf16.mxu0 0
  %982 = vmatpush1.bf16.xpose.msra.mxu0 0
  %983 = vmatprep.subr.bf16.mxu0 0
  %984 = vmatpush1.bf16.xpose.msra.mxu0 0
  %985 = vmatprep.subr.bf16.mxu0 0
  %986 = vmatpush1.bf16.xpose.msra.mxu0 0
  %987 = vmatprep.subr.bf16.mxu0 0
  %988 = vmatpush1.bf16.xpose.msra.mxu0 0
  %989 = vmatprep.subr.bf16.mxu0 0
  %990 = vmatpush1.bf16.xpose.msra.mxu0 0
  %991 = vmatprep.subr.bf16.mxu0 0
  %992 = vmatpush1.bf16.xpose.msra.mxu0 0
  %993 = vmatprep.mubr.bf16.mxu0 0
  %994 = vmatmul.mubr.bf16.gmra.mrb[0].mxu0 %v950
  %v995 = vpop.f32.mrb[0].mxu0
  %v996 = vadd.f32 0.0, %v995
  %v997 = vpop.f32.mrb[0].mxu0
  %v998 = vpop.f32.mrb[0].mxu0
  %v999 = vpop.f32.mrb[0].mxu0
  %1000 = vdwg.mxu0
  %v1001 = vpack.c.bf16 %v892, %v840
  %v1002 = vpack.c.bf16 %v996, %v944
  %v1004 = vlaneseq
  %v1005 = vshrl.u32 %v1004, 7
  %v1006 = vsub.s32 0, %v1005
  %v1007 = vrot.slane %v34, %v1006
  %1009 = vxpose.xlu0.c.b16.start [1/8] %v1001, 128
  %1010 = vxpose.xlu0.c.b16.cont [2/8] %v1002, 128
  %1011 = vxpose.xlu0.c.b16.cont [3/8] 0, 128
  %1012 = vxpose.xlu0.c.b16.cont [4/8] 0, 128
  %1013 = vxpose.xlu0.c.b16.cont [5/8] 0, 128
  %1014 = vxpose.xlu0.c.b16.cont [6/8] 0, 128
  %1015 = vxpose.xlu0.c.b16.cont [7/8] 0, 128
  %1016 = vxpose.xlu0.c.b16.end [8/8] 0, 128
  %v1017 = vpop.trf.xlu0
  %v1018 = vpop.trf.xlu0
  %v1019 = vpop.trf.xlu0
  %v1020 = vpop.trf.xlu0
  %v1021 = vpop.trf.xlu0
  %v1022 = vpop.trf.xlu0
  %v1023 = vpop.trf.xlu0
  %v1024 = vpop.trf.xlu0
  %v1029 = vunpack.c.l.b16 %v30
  %v1030 = vunpack.c.l.b16 %v31
  %v1031 = vunpack.c.l.b16 %v32
  %v1032 = vunpack.c.l.b16 %v33
  %v1033 = vpack.c.b16 %v1030, %v1029
  %v1034 = vpack.c.b16 %v1032, %v1031
  %v1038 = vsel %vm81, %v1017, 0
  %v1041 = vsel %vm81, %v1018, 0
  %v1044 = vsel %vm81, %v1019, 0
  %1046 = vmatprep.subr.bf16.mxu0 0
  %1047 = vmatpush1.bf16.msra.mxu0 %v1033
  %1048 = vmatprep.subr.bf16.mxu0 0
  %1049 = vmatpush1.bf16.msra.mxu0 %v1034
  %1050 = vmatprep.subr.bf16.mxu0 0
  %1051 = vmatpush1.bf16.msra.mxu0 0
  %1052 = vmatprep.subr.bf16.mxu0 0
  %1053 = vmatpush1.bf16.msra.mxu0 0
  %1054 = vmatprep.subr.bf16.mxu0 0
  %1055 = vmatpush1.bf16.msra.mxu0 0
  %1056 = vmatprep.subr.bf16.mxu0 0
  %1057 = vmatpush1.bf16.msra.mxu0 0
  %1058 = vmatprep.subr.bf16.mxu0 0
  %1059 = vmatpush1.bf16.msra.mxu0 0
  %1060 = vmatprep.subr.bf16.mxu0 0
  %1061 = vmatpush1.bf16.msra.mxu0 0
  %1062 = vmatprep.subr.bf16.mxu0 0
  %1063 = vmatpush1.bf16.msra.mxu0 0
  %1064 = vmatprep.subr.bf16.mxu0 0
  %1065 = vmatpush1.bf16.msra.mxu0 0
  %1066 = vmatprep.subr.bf16.mxu0 0
  %1067 = vmatpush1.bf16.msra.mxu0 0
  %1068 = vmatprep.subr.bf16.mxu0 0
  %1069 = vmatpush1.bf16.msra.mxu0 0
  %1070 = vmatprep.subr.bf16.mxu0 0
  %1071 = vmatpush1.bf16.msra.mxu0 0
  %1072 = vmatprep.subr.bf16.mxu0 0
  %1073 = vmatpush1.bf16.msra.mxu0 0
  %1074 = vmatprep.subr.bf16.mxu0 0
  %1075 = vmatpush1.bf16.msra.mxu0 0
  %1076 = vmatprep.subr.bf16.mxu0 0
  %1077 = vmatpush1.bf16.msra.mxu0 0
  %1078 = vmatprep.mubr.bf16.mxu0 0
  %1079 = vmatmul.mubr.bf16.gmra.mrb[0].mxu0 %v1038
  %v1080 = vpop.f32.mrb[0].mxu0
  %v1081 = vadd.f32 %v1007, %v1080
  %v1082 = vpop.f32.mrb[0].mxu0
  %v1083 = vpop.f32.mrb[0].mxu0
  %v1084 = vadd.f32 %v1007, %v1083
  %v1085 = vpop.f32.mrb[0].mxu0
  %1086 = vmatprep.mubr.bf16.mxu0 0
  %1087 = vmatmul.mubr.bf16.gmra.mrb[0].mxu0 %v1041
  %v1088 = vpop.f32.mrb[0].mxu0
  %v1089 = vadd.f32 %v1007, %v1088
  %v1090 = vpop.f32.mrb[0].mxu0
  %v1091 = vpop.f32.mrb[0].mxu0
  %v1092 = vadd.f32 %v1007, %v1091
  %v1093 = vpop.f32.mrb[0].mxu0
  %1094 = vmatprep.mubr.bf16.mxu0 0
  %1095 = vmatmul.mubr.bf16.gmra.mrb[0].mxu0 %v1044
  %v1096 = vpop.f32.mrb[0].mxu0
  %v1097 = vadd.f32 %v1007, %v1096
  %v1098 = vpop.f32.mrb[0].mxu0
  %v1099 = vpop.f32.mrb[0].mxu0
  %v1100 = vpop.f32.mrb[0].mxu0
  %1101 = vdwg.mxu0
  %1102 = vst.msk [vmem:[%s4] sm:$0xff] %vm81, %v1081
  %1103 = vst.msk [vmem:[%s4 + $0x8] sm:$0xff] %vm81, %v1084
  %1104 = vst.msk [vmem:[%s4 + $0x10] sm:$0xff] %vm81, %v1089
  %1105 = vst.msk [vmem:[%s4 + $0x18] sm:$0xff] %vm81, %v1092
  %vm1106 = vcmask 253952
  %1107 = vst.msk [vmem:[%s4 + $0x20] sm:$0x1] %vm1106, %v1097
  %s1108 = scalar_lea.vmem %s0, 16
  %v1109 = vld [vmem:[%s1108] sm:$0xf]
  %v1110 = vld [vmem:[%s1108 + $0x4] sm:$0xf]
  %v1111 = vld [vmem:[%s1108 + $0x8] sm:$0xf]
  %v1112 = vld [vmem:[%s1108 + $0xc] sm:$0xf]
  %v1117 = vunpack.c.l.b16 %v1109
  %v1118 = vunpack.c.l.b16 %v1110
  %v1119 = vunpack.c.l.b16 %v1111
  %v1120 = vunpack.c.l.b16 %v1112
  %v1121 = vpack.c.b16 %v1118, %v1117
  %v1122 = vpack.c.b16 %v1120, %v1119
  %1125 = vmatprep.subr.bf16.mxu0 0
  %1126 = vmatpush1.bf16.msra.mxu0 %v1121
  %1127 = vmatprep.subr.bf16.mxu0 0
  %1128 = vmatpush1.bf16.msra.mxu0 %v1122
  %1129 = vmatprep.subr.bf16.mxu0 0
  %1130 = vmatpush1.bf16.msra.mxu0 0
  %1131 = vmatprep.subr.bf16.mxu0 0
  %1132 = vmatpush1.bf16.msra.mxu0 0
  %1133 = vmatprep.subr.bf16.mxu0 0
  %1134 = vmatpush1.bf16.msra.mxu0 0
  %1135 = vmatprep.subr.bf16.mxu0 0
  %1136 = vmatpush1.bf16.msra.mxu0 0
  %1137 = vmatprep.subr.bf16.mxu0 0
  %1138 = vmatpush1.bf16.msra.mxu0 0
  %1139 = vmatprep.subr.bf16.mxu0 0
  %1140 = vmatpush1.bf16.msra.mxu0 0
  %1141 = vmatprep.subr.bf16.mxu0 0
  %1142 = vmatpush1.bf16.msra.mxu0 0
  %1143 = vmatprep.subr.bf16.mxu0 0
  %1144 = vmatpush1.bf16.msra.mxu0 0
  %1145 = vmatprep.subr.bf16.mxu0 0
  %1146 = vmatpush1.bf16.msra.mxu0 0
  %1147 = vmatprep.subr.bf16.mxu0 0
  %1148 = vmatpush1.bf16.msra.mxu0 0
  %1149 = vmatprep.subr.bf16.mxu0 0
  %1150 = vmatpush1.bf16.msra.mxu0 0
  %1151 = vmatprep.subr.bf16.mxu0 0
  %1152 = vmatpush1.bf16.msra.mxu0 0
  %1153 = vmatprep.subr.bf16.mxu0 0
  %1154 = vmatpush1.bf16.msra.mxu0 0
  %1155 = vmatprep.subr.bf16.mxu0 0
  %1156 = vmatpush1.bf16.msra.mxu0 0
  %1157 = vmatprep.mubr.bf16.mxu0 0
  %1158 = vmatmul.mubr.bf16.gmra.mrb[0].mxu0 %v83
  %v1159 = vpop.f32.mrb[0].mxu0
  %v1160 = vadd.f32 0.0, %v1159
  %v1161 = vpop.f32.mrb[0].mxu0
  %v1162 = vpop.f32.mrb[0].mxu0
  %v1163 = vadd.f32 0.0, %v1162
  %v1164 = vpop.f32.mrb[0].mxu0
  %1165 = vmatprep.mubr.bf16.mxu0 0
  %1166 = vmatmul.mubr.bf16.gmra.mrb[0].mxu0 %v86
  %v1167 = vpop.f32.mrb[0].mxu0
  %v1168 = vadd.f32 0.0, %v1167
  %v1169 = vpop.f32.mrb[0].mxu0
  %v1170 = vpop.f32.mrb[0].mxu0
  %v1171 = vadd.f32 0.0, %v1170
  %v1172 = vpop.f32.mrb[0].mxu0
  %1173 = vmatprep.mubr.bf16.mxu0 0
  %1174 = vmatmul.mubr.bf16.gmra.mrb[0].mxu0 %v89
  %v1175 = vpop.f32.mrb[0].mxu0
  %v1176 = vadd.f32 0.0, %v1175
  %v1177 = vpop.f32.mrb[0].mxu0
  %v1178 = vpop.f32.mrb[0].mxu0
  %v1179 = vadd.f32 0.0, %v1178
  %v1180 = vpop.f32.mrb[0].mxu0
  %1181 = vmatprep.mubr.bf16.mxu0 0
  %1182 = vmatmul.mubr.bf16.gmra.mrb[0].mxu0 %v92
  %v1183 = vpop.f32.mrb[0].mxu0
  %v1184 = vadd.f32 0.0, %v1183
  %v1185 = vpop.f32.mrb[0].mxu0
  %v1186 = vpop.f32.mrb[0].mxu0
  %v1187 = vadd.f32 0.0, %v1186
  %v1188 = vpop.f32.mrb[0].mxu0
  %1189 = vmatprep.mubr.bf16.mxu0 0
  %1190 = vmatmul.mubr.bf16.gmra.mrb[0].mxu0 %v95
  %v1191 = vpop.f32.mrb[0].mxu0
  %v1192 = vadd.f32 0.0, %v1191
  %v1193 = vpop.f32.mrb[0].mxu0
  %v1194 = vpop.f32.mrb[0].mxu0
  %v1195 = vadd.f32 0.0, %v1194
  %v1196 = vpop.f32.mrb[0].mxu0
  %1197 = vmatprep.mubr.bf16.mxu0 0
  %1198 = vmatmul.mubr.bf16.gmra.mrb[0].mxu0 %v98
  %v1199 = vpop.f32.mrb[0].mxu0
  %v1200 = vadd.f32 0.0, %v1199
  %v1201 = vpop.f32.mrb[0].mxu0
  %v1202 = vpop.f32.mrb[0].mxu0
  %v1203 = vadd.f32 0.0, %v1202
  %v1204 = vpop.f32.mrb[0].mxu0
  %1205 = vdwg.mxu0
  %v1206 = vpack.c.bf16 %v1163, %v1160
  %v1207 = vpack.c.bf16 %v1171, %v1168
  %v1210 = vunpack.c.l.b16 %v1206
  %v1211 = vunpack.c.h.b16 %v1206
  %v1212 = vunpack.c.l.b16 %v1207
  %v1213 = vunpack.c.h.b16 %v1207
  %v1214 = vpack.c.b16 %v1210, %v1210
  %v1215 = vpack.c.b16 %v1211, %v1211
  %v1216 = vpack.c.b16 %v1212, %v1212
  %v1217 = vpack.c.b16 %v1213, %v1213
  %v1222 = vpack.c.bf16 %v1179, %v1176
  %v1223 = vpack.c.bf16 %v1187, %v1184
  %v1226 = vunpack.c.l.b16 %v1222
  %v1227 = vunpack.c.h.b16 %v1222
  %v1228 = vunpack.c.l.b16 %v1223
  %v1229 = vunpack.c.h.b16 %v1223
  %v1230 = vpack.c.b16 %v1226, %v1226
  %v1231 = vpack.c.b16 %v1227, %v1227
  %v1232 = vpack.c.b16 %v1228, %v1228
  %v1233 = vpack.c.b16 %v1229, %v1229
  %v1234 = vpack.c.bf16 %v1195, %v1192
  %v1235 = vpack.c.bf16 %v1203, %v1200
  %v1238 = vunpack.c.l.b16 %v1234
  %v1239 = vunpack.c.h.b16 %v1234
  %v1240 = vunpack.c.l.b16 %v1235
  %v1241 = vunpack.c.h.b16 %v1235
  %v1242 = vpack.c.b16 %v1238, %v1238
  %v1243 = vpack.c.b16 %v1239, %v1239
  %v1244 = vpack.c.b16 %v1240, %v1240
  %v1245 = vpack.c.b16 %v1241, %v1241
  %1246 = vxpose.xlu0.c.b16.start [1/8] %v1214, 128
  %1247 = vxpose.xlu0.c.b16.cont [2/8] 0, 128
  %1248 = vxpose.xlu0.c.b16.cont [3/8] 0, 128
  %1249 = vxpose.xlu0.c.b16.cont [4/8] 0, 128
  %1250 = vxpose.xlu0.c.b16.cont [5/8] 0, 128
  %1251 = vxpose.xlu0.c.b16.cont [6/8] 0, 128
  %1252 = vxpose.xlu0.c.b16.cont [7/8] 0, 128
  %1253 = vxpose.xlu0.c.b16.end [8/8] 0, 128
  %v1254 = vpop.trf.xlu0
  %v1255 = vpop.trf.xlu0
  %v1256 = vpop.trf.xlu0
  %v1257 = vpop.trf.xlu0
  %v1258 = vpop.trf.xlu0
  %v1259 = vpop.trf.xlu0
  %v1260 = vpop.trf.xlu0
  %v1261 = vpop.trf.xlu0
  %v1263 = vsel %vm237, %v1254, 0
  %v1266 = vsel %vm237, %v1255, 0
  %v1269 = vsel %vm237, %v1256, 0
  %v1272 = vsel %vm247, %v1230, 0
  %1274 = vmatprep.subr.bf16.mxu0 0
  %1275 = vmatpush1.bf16.msra.mxu0 %v1272
  %1276 = vmatprep.subr.bf16.mxu0 0
  %1277 = vmatpush1.bf16.msra.mxu0 0
  %1278 = vmatprep.subr.bf16.mxu0 0
  %1279 = vmatpush1.bf16.msra.mxu0 0
  %1280 = vmatprep.subr.bf16.mxu0 0
  %1281 = vmatpush1.bf16.msra.mxu0 0
  %1282 = vmatprep.subr.bf16.mxu0 0
  %1283 = vmatpush1.bf16.msra.mxu0 0
  %1284 = vmatprep.subr.bf16.mxu0 0
  %1285 = vmatpush1.bf16.msra.mxu0 0
  %1286 = vmatprep.subr.bf16.mxu0 0
  %1287 = vmatpush1.bf16.msra.mxu0 0
  %1288 = vmatprep.subr.bf16.mxu0 0
  %1289 = vmatpush1.bf16.msra.mxu0 0
  %1290 = vmatprep.subr.bf16.mxu0 0
  %1291 = vmatpush1.bf16.msra.mxu0 0
  %1292 = vmatprep.subr.bf16.mxu0 0
  %1293 = vmatpush1.bf16.msra.mxu0 0
  %1294 = vmatprep.subr.bf16.mxu0 0
  %1295 = vmatpush1.bf16.msra.mxu0 0
  %1296 = vmatprep.subr.bf16.mxu0 0
  %1297 = vmatpush1.bf16.msra.mxu0 0
  %1298 = vmatprep.subr.bf16.mxu0 0
  %1299 = vmatpush1.bf16.msra.mxu0 0
  %1300 = vmatprep.subr.bf16.mxu0 0
  %1301 = vmatpush1.bf16.msra.mxu0 0
  %1302 = vmatprep.subr.bf16.mxu0 0
  %1303 = vmatpush1.bf16.msra.mxu0 0
  %1304 = vmatprep.subr.bf16.mxu0 0
  %1305 = vmatpush1.bf16.msra.mxu0 0
  %1306 = vmatprep.mubr.bf16.mxu0 0
  %1307 = vmatmul.mubr.bf16.gmra.mrb[0].mxu0 %v1263
  %v1308 = vpop.f32.mrb[0].mxu0
  %v1309 = vadd.f32 0.0, %v1308
  %v1310 = vpop.f32.mrb[0].mxu0
  %v1311 = vpop.f32.mrb[0].mxu0
  %v1312 = vadd.f32 0.0, %v1311
  %v1313 = vpop.f32.mrb[0].mxu0
  %1314 = vmatprep.mubr.bf16.mxu0 0
  %1315 = vmatmul.mubr.bf16.gmra.mrb[0].mxu0 %v1266
  %v1316 = vpop.f32.mrb[0].mxu0
  %v1317 = vadd.f32 0.0, %v1316
  %v1318 = vpop.f32.mrb[0].mxu0
  %v1319 = vpop.f32.mrb[0].mxu0
  %v1320 = vadd.f32 0.0, %v1319
  %v1321 = vpop.f32.mrb[0].mxu0
  %1322 = vmatprep.mubr.bf16.mxu0 0
  %1323 = vmatmul.mubr.bf16.gmra.mrb[0].mxu0 %v1269
  %v1324 = vpop.f32.mrb[0].mxu0
  %v1325 = vadd.f32 0.0, %v1324
  %v1326 = vpop.f32.mrb[0].mxu0
  %v1327 = vpop.f32.mrb[0].mxu0
  %v1328 = vpop.f32.mrb[0].mxu0
  %1329 = vdwg.mxu0
  %1330 = vxpose.xlu0.c.b16.start [1/8] %v1215, 128
  %1331 = vxpose.xlu0.c.b16.cont [2/8] 0, 128
  %1332 = vxpose.xlu0.c.b16.cont [3/8] 0, 128
  %1333 = vxpose.xlu0.c.b16.cont [4/8] 0, 128
  %1334 = vxpose.xlu0.c.b16.cont [5/8] 0, 128
  %1335 = vxpose.xlu0.c.b16.cont [6/8] 0, 128
  %1336 = vxpose.xlu0.c.b16.cont [7/8] 0, 128
  %1337 = vxpose.xlu0.c.b16.end [8/8] 0, 128
  %v1338 = vpop.trf.xlu0
  %v1339 = vpop.trf.xlu0
  %v1340 = vpop.trf.xlu0
  %v1341 = vpop.trf.xlu0
  %v1342 = vpop.trf.xlu0
  %v1343 = vpop.trf.xlu0
  %v1344 = vpop.trf.xlu0
  %v1345 = vpop.trf.xlu0
  %v1347 = vsel %vm237, %v1338, 0
  %v1350 = vsel %vm237, %v1339, 0
  %v1353 = vsel %vm237, %v1340, 0
  %v1356 = vsel %vm247, %v1231, 0
  %1358 = vmatprep.subr.bf16.mxu0 0
  %1359 = vmatpush1.bf16.msra.mxu0 %v1356
  %1360 = vmatprep.subr.bf16.mxu0 0
  %1361 = vmatpush1.bf16.msra.mxu0 0
  %1362 = vmatprep.subr.bf16.mxu0 0
  %1363 = vmatpush1.bf16.msra.mxu0 0
  %1364 = vmatprep.subr.bf16.mxu0 0
  %1365 = vmatpush1.bf16.msra.mxu0 0
  %1366 = vmatprep.subr.bf16.mxu0 0
  %1367 = vmatpush1.bf16.msra.mxu0 0
  %1368 = vmatprep.subr.bf16.mxu0 0
  %1369 = vmatpush1.bf16.msra.mxu0 0
  %1370 = vmatprep.subr.bf16.mxu0 0
  %1371 = vmatpush1.bf16.msra.mxu0 0
  %1372 = vmatprep.subr.bf16.mxu0 0
  %1373 = vmatpush1.bf16.msra.mxu0 0
  %1374 = vmatprep.subr.bf16.mxu0 0
  %1375 = vmatpush1.bf16.msra.mxu0 0
  %1376 = vmatprep.subr.bf16.mxu0 0
  %1377 = vmatpush1.bf16.msra.mxu0 0
  %1378 = vmatprep.subr.bf16.mxu0 0
  %1379 = vmatpush1.bf16.msra.mxu0 0
  %1380 = vmatprep.subr.bf16.mxu0 0
  %1381 = vmatpush1.bf16.msra.mxu0 0
  %1382 = vmatprep.subr.bf16.mxu0 0
  %1383 = vmatpush1.bf16.msra.mxu0 0
  %1384 = vmatprep.subr.bf16.mxu0 0
  %1385 = vmatpush1.bf16.msra.mxu0 0
  %1386 = vmatprep.subr.bf16.mxu0 0
  %1387 = vmatpush1.bf16.msra.mxu0 0
  %1388 = vmatprep.subr.bf16.mxu0 0
  %1389 = vmatpush1.bf16.msra.mxu0 0
  %1390 = vmatprep.mubr.bf16.mxu0 0
  %1391 = vmatmul.mubr.bf16.gmra.mrb[0].mxu0 %v1347
  %v1392 = vpop.f32.mrb[0].mxu0
  %v1393 = vadd.f32 0.0, %v1392
  %v1394 = vpop.f32.mrb[0].mxu0
  %v1395 = vpop.f32.mrb[0].mxu0
  %v1396 = vadd.f32 0.0, %v1395
  %v1397 = vpop.f32.mrb[0].mxu0
  %1398 = vmatprep.mubr.bf16.mxu0 0
  %1399 = vmatmul.mubr.bf16.gmra.mrb[0].mxu0 %v1350
  %v1400 = vpop.f32.mrb[0].mxu0
  %v1401 = vadd.f32 0.0, %v1400
  %v1402 = vpop.f32.mrb[0].mxu0
  %v1403 = vpop.f32.mrb[0].mxu0
  %v1404 = vadd.f32 0.0, %v1403
  %v1405 = vpop.f32.mrb[0].mxu0
  %1406 = vmatprep.mubr.bf16.mxu0 0
  %1407 = vmatmul.mubr.bf16.gmra.mrb[0].mxu0 %v1353
  %v1408 = vpop.f32.mrb[0].mxu0
  %v1409 = vadd.f32 0.0, %v1408
  %v1410 = vpop.f32.mrb[0].mxu0
  %v1411 = vpop.f32.mrb[0].mxu0
  %v1412 = vpop.f32.mrb[0].mxu0
  %1413 = vdwg.mxu0
  %1414 = vxpose.xlu0.c.b16.start [1/8] %v1216, 128
  %1415 = vxpose.xlu0.c.b16.cont [2/8] 0, 128
  %1416 = vxpose.xlu0.c.b16.cont [3/8] 0, 128
  %1417 = vxpose.xlu0.c.b16.cont [4/8] 0, 128
  %1418 = vxpose.xlu0.c.b16.cont [5/8] 0, 128
  %1419 = vxpose.xlu0.c.b16.cont [6/8] 0, 128
  %1420 = vxpose.xlu0.c.b16.cont [7/8] 0, 128
  %1421 = vxpose.xlu0.c.b16.end [8/8] 0, 128
  %v1422 = vpop.trf.xlu0
  %v1423 = vpop.trf.xlu0
  %v1424 = vpop.trf.xlu0
  %v1425 = vpop.trf.xlu0
  %v1426 = vpop.trf.xlu0
  %v1427 = vpop.trf.xlu0
  %v1428 = vpop.trf.xlu0
  %v1429 = vpop.trf.xlu0
  %v1431 = vsel %vm237, %v1422, 0
  %v1434 = vsel %vm237, %v1423, 0
  %v1437 = vsel %vm237, %v1424, 0
  %v1440 = vsel %vm247, %v1232, 0
  %1442 = vmatprep.subr.bf16.mxu0 0
  %1443 = vmatpush1.bf16.msra.mxu0 %v1440
  %1444 = vmatprep.subr.bf16.mxu0 0
  %1445 = vmatpush1.bf16.msra.mxu0 0
  %1446 = vmatprep.subr.bf16.mxu0 0
  %1447 = vmatpush1.bf16.msra.mxu0 0
  %1448 = vmatprep.subr.bf16.mxu0 0
  %1449 = vmatpush1.bf16.msra.mxu0 0
  %1450 = vmatprep.subr.bf16.mxu0 0
  %1451 = vmatpush1.bf16.msra.mxu0 0
  %1452 = vmatprep.subr.bf16.mxu0 0
  %1453 = vmatpush1.bf16.msra.mxu0 0
  %1454 = vmatprep.subr.bf16.mxu0 0
  %1455 = vmatpush1.bf16.msra.mxu0 0
  %1456 = vmatprep.subr.bf16.mxu0 0
  %1457 = vmatpush1.bf16.msra.mxu0 0
  %1458 = vmatprep.subr.bf16.mxu0 0
  %1459 = vmatpush1.bf16.msra.mxu0 0
  %1460 = vmatprep.subr.bf16.mxu0 0
  %1461 = vmatpush1.bf16.msra.mxu0 0
  %1462 = vmatprep.subr.bf16.mxu0 0
  %1463 = vmatpush1.bf16.msra.mxu0 0
  %1464 = vmatprep.subr.bf16.mxu0 0
  %1465 = vmatpush1.bf16.msra.mxu0 0
  %1466 = vmatprep.subr.bf16.mxu0 0
  %1467 = vmatpush1.bf16.msra.mxu0 0
  %1468 = vmatprep.subr.bf16.mxu0 0
  %1469 = vmatpush1.bf16.msra.mxu0 0
  %1470 = vmatprep.subr.bf16.mxu0 0
  %1471 = vmatpush1.bf16.msra.mxu0 0
  %1472 = vmatprep.subr.bf16.mxu0 0
  %1473 = vmatpush1.bf16.msra.mxu0 0
  %1474 = vmatprep.mubr.bf16.mxu0 0
  %1475 = vmatmul.mubr.bf16.gmra.mrb[0].mxu0 %v1431
  %v1476 = vpop.f32.mrb[0].mxu0
  %v1477 = vadd.f32 0.0, %v1476
  %v1478 = vpop.f32.mrb[0].mxu0
  %v1479 = vpop.f32.mrb[0].mxu0
  %v1480 = vadd.f32 0.0, %v1479
  %v1481 = vpop.f32.mrb[0].mxu0
  %1482 = vmatprep.mubr.bf16.mxu0 0
  %1483 = vmatmul.mubr.bf16.gmra.mrb[0].mxu0 %v1434
  %v1484 = vpop.f32.mrb[0].mxu0
  %v1485 = vadd.f32 0.0, %v1484
  %v1486 = vpop.f32.mrb[0].mxu0
  %v1487 = vpop.f32.mrb[0].mxu0
  %v1488 = vadd.f32 0.0, %v1487
  %v1489 = vpop.f32.mrb[0].mxu0
  %1490 = vmatprep.mubr.bf16.mxu0 0
  %1491 = vmatmul.mubr.bf16.gmra.mrb[0].mxu0 %v1437
  %v1492 = vpop.f32.mrb[0].mxu0
  %v1493 = vadd.f32 0.0, %v1492
  %v1494 = vpop.f32.mrb[0].mxu0
  %v1495 = vpop.f32.mrb[0].mxu0
  %v1496 = vpop.f32.mrb[0].mxu0
  %1497 = vdwg.mxu0
  %1498 = vxpose.xlu0.c.b16.start [1/8] %v1217, 128
  %1499 = vxpose.xlu0.c.b16.cont [2/8] 0, 128
  %1500 = vxpose.xlu0.c.b16.cont [3/8] 0, 128
  %1501 = vxpose.xlu0.c.b16.cont [4/8] 0, 128
  %1502 = vxpose.xlu0.c.b16.cont [5/8] 0, 128
  %1503 = vxpose.xlu0.c.b16.cont [6/8] 0, 128
  %1504 = vxpose.xlu0.c.b16.cont [7/8] 0, 128
  %1505 = vxpose.xlu0.c.b16.end [8/8] 0, 128
  %v1506 = vpop.trf.xlu0
  %v1507 = vpop.trf.xlu0
  %v1508 = vpop.trf.xlu0
  %v1509 = vpop.trf.xlu0
  %v1510 = vpop.trf.xlu0
  %v1511 = vpop.trf.xlu0
  %v1512 = vpop.trf.xlu0
  %v1513 = vpop.trf.xlu0
  %v1515 = vsel %vm237, %v1506, 0
  %v1518 = vsel %vm237, %v1507, 0
  %v1521 = vsel %vm237, %v1508, 0
  %v1524 = vsel %vm247, %v1233, 0
  %1526 = vmatprep.subr.bf16.mxu0 0
  %1527 = vmatpush1.bf16.msra.mxu0 %v1524
  %1528 = vmatprep.subr.bf16.mxu0 0
  %1529 = vmatpush1.bf16.msra.mxu0 0
  %1530 = vmatprep.subr.bf16.mxu0 0
  %1531 = vmatpush1.bf16.msra.mxu0 0
  %1532 = vmatprep.subr.bf16.mxu0 0
  %1533 = vmatpush1.bf16.msra.mxu0 0
  %1534 = vmatprep.subr.bf16.mxu0 0
  %1535 = vmatpush1.bf16.msra.mxu0 0
  %1536 = vmatprep.subr.bf16.mxu0 0
  %1537 = vmatpush1.bf16.msra.mxu0 0
  %1538 = vmatprep.subr.bf16.mxu0 0
  %1539 = vmatpush1.bf16.msra.mxu0 0
  %1540 = vmatprep.subr.bf16.mxu0 0
  %1541 = vmatpush1.bf16.msra.mxu0 0
  %1542 = vmatprep.subr.bf16.mxu0 0
  %1543 = vmatpush1.bf16.msra.mxu0 0
  %1544 = vmatprep.subr.bf16.mxu0 0
  %1545 = vmatpush1.bf16.msra.mxu0 0
  %1546 = vmatprep.subr.bf16.mxu0 0
  %1547 = vmatpush1.bf16.msra.mxu0 0
  %1548 = vmatprep.subr.bf16.mxu0 0
  %1549 = vmatpush1.bf16.msra.mxu0 0
  %1550 = vmatprep.subr.bf16.mxu0 0
  %1551 = vmatpush1.bf16.msra.mxu0 0
  %1552 = vmatprep.subr.bf16.mxu0 0
  %1553 = vmatpush1.bf16.msra.mxu0 0
  %1554 = vmatprep.subr.bf16.mxu0 0
  %1555 = vmatpush1.bf16.msra.mxu0 0
  %1556 = vmatprep.subr.bf16.mxu0 0
  %1557 = vmatpush1.bf16.msra.mxu0 0
  %1558 = vmatprep.mubr.bf16.mxu0 0
  %1559 = vmatmul.mubr.bf16.gmra.mrb[0].mxu0 %v1515
  %v1560 = vpop.f32.mrb[0].mxu0
  %v1561 = vadd.f32 0.0, %v1560
  %v1562 = vpop.f32.mrb[0].mxu0
  %v1563 = vpop.f32.mrb[0].mxu0
  %v1564 = vadd.f32 0.0, %v1563
  %v1565 = vpop.f32.mrb[0].mxu0
  %1566 = vmatprep.mubr.bf16.mxu0 0
  %1567 = vmatmul.mubr.bf16.gmra.mrb[0].mxu0 %v1518
  %v1568 = vpop.f32.mrb[0].mxu0
  %v1569 = vadd.f32 0.0, %v1568
  %v1570 = vpop.f32.mrb[0].mxu0
  %v1571 = vpop.f32.mrb[0].mxu0
  %v1572 = vadd.f32 0.0, %v1571
  %v1573 = vpop.f32.mrb[0].mxu0
  %1574 = vmatprep.mubr.bf16.mxu0 0
  %1575 = vmatmul.mubr.bf16.gmra.mrb[0].mxu0 %v1521
  %v1576 = vpop.f32.mrb[0].mxu0
  %v1577 = vadd.f32 0.0, %v1576
  %v1578 = vpop.f32.mrb[0].mxu0
  %v1579 = vpop.f32.mrb[0].mxu0
  %v1580 = vpop.f32.mrb[0].mxu0
  %1581 = vdwg.mxu0
  %v1582 = vsel %vm559, %v1309, -inf
  %1583 = vmax.xlane.f32.xlu0 %v1582
  %v1584 = vpop.xlane.xlu0 %1583
  %v1585 = vsel %vm559, %v1312, -inf
  %1586 = vmax.xlane.f32.xlu0 %v1585
  %v1587 = vpop.xlane.xlu0 %1586
  %v1588 = vsel %vm559, %v1317, -inf
  %1589 = vmax.xlane.f32.xlu0 %v1588
  %v1590 = vpop.xlane.xlu0 %1589
  %v1591 = vsel %vm559, %v1320, -inf
  %1592 = vmax.xlane.f32.xlu0 %v1591
  %v1593 = vpop.xlane.xlu0 %1592
  %v1594 = vsel %vm572, %v1325, -inf
  %1595 = vmax.xlane.f32.xlu0 %v1594
  %v1596 = vpop.xlane.xlu0 %1595
  %v1597 = vsel %vm559, %v1393, -inf
  %1598 = vmax.xlane.f32.xlu0 %v1597
  %v1599 = vpop.xlane.xlu0 %1598
  %v1600 = vsel %vm559, %v1396, -inf
  %1601 = vmax.xlane.f32.xlu0 %v1600
  %v1602 = vpop.xlane.xlu0 %1601
  %v1603 = vsel %vm559, %v1401, -inf
  %1604 = vmax.xlane.f32.xlu0 %v1603
  %v1605 = vpop.xlane.xlu0 %1604
  %v1606 = vsel %vm559, %v1404, -inf
  %1607 = vmax.xlane.f32.xlu0 %v1606
  %v1608 = vpop.xlane.xlu0 %1607
  %v1609 = vsel %vm572, %v1409, -inf
  %1610 = vmax.xlane.f32.xlu0 %v1609
  %v1611 = vpop.xlane.xlu0 %1610
  %v1612 = vsel %vm559, %v1477, -inf
  %1613 = vmax.xlane.f32.xlu0 %v1612
  %v1614 = vpop.xlane.xlu0 %1613
  %v1615 = vsel %vm559, %v1480, -inf
  %1616 = vmax.xlane.f32.xlu0 %v1615
  %v1617 = vpop.xlane.xlu0 %1616
  %v1618 = vsel %vm559, %v1485, -inf
  %1619 = vmax.xlane.f32.xlu0 %v1618
  %v1620 = vpop.xlane.xlu0 %1619
  %v1621 = vsel %vm559, %v1488, -inf
  %1622 = vmax.xlane.f32.xlu0 %v1621
  %v1623 = vpop.xlane.xlu0 %1622
  %v1624 = vsel %vm572, %v1493, -inf
  %1625 = vmax.xlane.f32.xlu0 %v1624
  %v1626 = vpop.xlane.xlu0 %1625
  %v1627 = vsel %vm559, %v1561, -inf
  %1628 = vmax.xlane.f32.xlu0 %v1627
  %v1629 = vpop.xlane.xlu0 %1628
  %v1630 = vsel %vm559, %v1564, -inf
  %1631 = vmax.xlane.f32.xlu0 %v1630
  %v1632 = vpop.xlane.xlu0 %1631
  %v1633 = vsel %vm559, %v1569, -inf
  %1634 = vmax.xlane.f32.xlu0 %v1633
  %v1635 = vpop.xlane.xlu0 %1634
  %v1636 = vsel %vm559, %v1572, -inf
  %1637 = vmax.xlane.f32.xlu0 %v1636
  %v1638 = vpop.xlane.xlu0 %1637
  %v1639 = vsel %vm572, %v1577, -inf
  %1640 = vmax.xlane.f32.xlu0 %v1639
  %v1641 = vpop.xlane.xlu0 %1640
  %v1642 = vsub.f32 %v1309, %v1584
  %v1643 = vsub.f32 %v1312, %v1587
  %v1644 = vsub.f32 %v1317, %v1590
  %v1645 = vsub.f32 %v1320, %v1593
  %v1646 = vsub.f32 %v1325, %v1596
  %v1647 = vsub.f32 %v1393, %v1599
  %v1648 = vsub.f32 %v1396, %v1602
  %v1649 = vsub.f32 %v1401, %v1605
  %v1650 = vsub.f32 %v1404, %v1608
  %v1651 = vsub.f32 %v1409, %v1611
  %v1652 = vsub.f32 %v1477, %v1614
  %v1653 = vsub.f32 %v1480, %v1617
  %v1654 = vsub.f32 %v1485, %v1620
  %v1655 = vsub.f32 %v1488, %v1623
  %v1656 = vsub.f32 %v1493, %v1626
  %v1657 = vsub.f32 %v1561, %v1629
  %v1658 = vsub.f32 %v1564, %v1632
  %v1659 = vsub.f32 %v1569, %v1635
  %v1660 = vsub.f32 %v1572, %v1638
  %v1661 = vsub.f32 %v1577, %v1641
  %v1662 = vmul.f32 %v1642, 1.442695
  %v1663 = vpow.pop %v1662
  %v1664 = vmul.f32 %v1643, 1.442695
  %v1665 = vpow.pop %v1664
  %v1666 = vmul.f32 %v1644, 1.442695
  %v1667 = vpow.pop %v1666
  %v1668 = vmul.f32 %v1645, 1.442695
  %v1669 = vpow.pop %v1668
  %v1670 = vmul.f32 %v1646, 1.442695
  %v1671 = vpow.pop %v1670
  %v1672 = vmul.f32 %v1647, 1.442695
  %v1673 = vpow.pop %v1672
  %v1674 = vmul.f32 %v1648, 1.442695
  %v1675 = vpow.pop %v1674
  %v1676 = vmul.f32 %v1649, 1.442695
  %v1677 = vpow.pop %v1676
  %v1678 = vmul.f32 %v1650, 1.442695
  %v1679 = vpow.pop %v1678
  %v1680 = vmul.f32 %v1651, 1.442695
  %v1681 = vpow.pop %v1680
  %v1682 = vmul.f32 %v1652, 1.442695
  %v1683 = vpow.pop %v1682
  %v1684 = vmul.f32 %v1653, 1.442695
  %v1685 = vpow.pop %v1684
  %v1686 = vmul.f32 %v1654, 1.442695
  %v1687 = vpow.pop %v1686
  %v1688 = vmul.f32 %v1655, 1.442695
  %v1689 = vpow.pop %v1688
  %v1690 = vmul.f32 %v1656, 1.442695
  %v1691 = vpow.pop %v1690
  %v1692 = vmul.f32 %v1657, 1.442695
  %v1693 = vpow.pop %v1692
  %v1694 = vmul.f32 %v1658, 1.442695
  %v1695 = vpow.pop %v1694
  %v1696 = vmul.f32 %v1659, 1.442695
  %v1697 = vpow.pop %v1696
  %v1698 = vmul.f32 %v1660, 1.442695
  %v1699 = vpow.pop %v1698
  %v1700 = vmul.f32 %v1661, 1.442695
  %v1701 = vpow.pop %v1700
  %v1702 = vsel %vm559, %v1663, 0.0
  %1703 = vadd.xlane.f32.xlu0 %v1702
  %v1704 = vpop.xlane.xlu0 %1703
  %v1705 = vsel %vm559, %v1665, 0.0
  %1706 = vadd.xlane.f32.xlu0 %v1705
  %v1707 = vpop.xlane.xlu0 %1706
  %v1708 = vsel %vm559, %v1667, 0.0
  %1709 = vadd.xlane.f32.xlu0 %v1708
  %v1710 = vpop.xlane.xlu0 %1709
  %v1711 = vsel %vm559, %v1669, 0.0
  %1712 = vadd.xlane.f32.xlu0 %v1711
  %v1713 = vpop.xlane.xlu0 %1712
  %v1714 = vsel %vm572, %v1671, 0.0
  %1715 = vadd.xlane.f32.xlu0 %v1714
  %v1716 = vpop.xlane.xlu0 %1715
  %v1717 = vsel %vm559, %v1673, 0.0
  %1718 = vadd.xlane.f32.xlu0 %v1717
  %v1719 = vpop.xlane.xlu0 %1718
  %v1720 = vsel %vm559, %v1675, 0.0
  %1721 = vadd.xlane.f32.xlu0 %v1720
  %v1722 = vpop.xlane.xlu0 %1721
  %v1723 = vsel %vm559, %v1677, 0.0
  %1724 = vadd.xlane.f32.xlu0 %v1723
  %v1725 = vpop.xlane.xlu0 %1724
  %v1726 = vsel %vm559, %v1679, 0.0
  %1727 = vadd.xlane.f32.xlu0 %v1726
  %v1728 = vpop.xlane.xlu0 %1727
  %v1729 = vsel %vm572, %v1681, 0.0
  %1730 = vadd.xlane.f32.xlu0 %v1729
  %v1731 = vpop.xlane.xlu0 %1730
  %v1732 = vsel %vm559, %v1683, 0.0
  %1733 = vadd.xlane.f32.xlu0 %v1732
  %v1734 = vpop.xlane.xlu0 %1733
  %v1735 = vsel %vm559, %v1685, 0.0
  %1736 = vadd.xlane.f32.xlu0 %v1735
  %v1737 = vpop.xlane.xlu0 %1736
  %v1738 = vsel %vm559, %v1687, 0.0
  %1739 = vadd.xlane.f32.xlu0 %v1738
  %v1740 = vpop.xlane.xlu0 %1739
  %v1741 = vsel %vm559, %v1689, 0.0
  %1742 = vadd.xlane.f32.xlu0 %v1741
  %v1743 = vpop.xlane.xlu0 %1742
  %v1744 = vsel %vm572, %v1691, 0.0
  %1745 = vadd.xlane.f32.xlu0 %v1744
  %v1746 = vpop.xlane.xlu0 %1745
  %v1747 = vsel %vm559, %v1693, 0.0
  %1748 = vadd.xlane.f32.xlu0 %v1747
  %v1749 = vpop.xlane.xlu0 %1748
  %v1750 = vsel %vm559, %v1695, 0.0
  %1751 = vadd.xlane.f32.xlu0 %v1750
  %v1752 = vpop.xlane.xlu0 %1751
  %v1753 = vsel %vm559, %v1697, 0.0
  %1754 = vadd.xlane.f32.xlu0 %v1753
  %v1755 = vpop.xlane.xlu0 %1754
  %v1756 = vsel %vm559, %v1699, 0.0
  %1757 = vadd.xlane.f32.xlu0 %v1756
  %v1758 = vpop.xlane.xlu0 %1757
  %v1759 = vsel %vm572, %v1701, 0.0
  %1760 = vadd.xlane.f32.xlu0 %v1759
  %v1761 = vpop.xlane.xlu0 %1760
  %v1762 = vrcp.pop %v1704
  %v1763 = vrcp.pop %v1707
  %v1764 = vrcp.pop %v1710
  %v1765 = vrcp.pop %v1713
  %v1766 = vrcp.pop %v1716
  %v1767 = vrcp.pop %v1719
  %v1768 = vrcp.pop %v1722
  %v1769 = vrcp.pop %v1725
  %v1770 = vrcp.pop %v1728
  %v1771 = vrcp.pop %v1731
  %v1772 = vrcp.pop %v1734
  %v1773 = vrcp.pop %v1737
  %v1774 = vrcp.pop %v1740
  %v1775 = vrcp.pop %v1743
  %v1776 = vrcp.pop %v1746
  %v1777 = vrcp.pop %v1749
  %v1778 = vrcp.pop %v1752
  %v1779 = vrcp.pop %v1755
  %v1780 = vrcp.pop %v1758
  %v1781 = vrcp.pop %v1761
  %v1782 = vmul.f32 %v1663, %v1762
  %v1783 = vmul.f32 %v1665, %v1763
  %v1784 = vmul.f32 %v1667, %v1764
  %v1785 = vmul.f32 %v1669, %v1765
  %v1786 = vmul.f32 %v1671, %v1766
  %v1787 = vmul.f32 %v1673, %v1767
  %v1788 = vmul.f32 %v1675, %v1768
  %v1789 = vmul.f32 %v1677, %v1769
  %v1790 = vmul.f32 %v1679, %v1770
  %v1791 = vmul.f32 %v1681, %v1771
  %v1792 = vmul.f32 %v1683, %v1772
  %v1793 = vmul.f32 %v1685, %v1773
  %v1794 = vmul.f32 %v1687, %v1774
  %v1795 = vmul.f32 %v1689, %v1775
  %v1796 = vmul.f32 %v1691, %v1776
  %v1797 = vmul.f32 %v1693, %v1777
  %v1798 = vmul.f32 %v1695, %v1778
  %v1799 = vmul.f32 %v1697, %v1779
  %v1800 = vmul.f32 %v1699, %v1780
  %v1801 = vmul.f32 %v1701, %v1781
  %v1802 = vpack.c.bf16 %v1783, %v1782
  %v1803 = vpack.c.bf16 %v1785, %v1784
  %v1804 = vpack.c.bf16 %v1786, %v1786
  %v1805 = vpack.c.bf16 %v1788, %v1787
  %v1806 = vpack.c.bf16 %v1790, %v1789
  %v1807 = vpack.c.bf16 %v1791, %v1791
  %v1808 = vpack.c.bf16 %v1793, %v1792
  %v1809 = vpack.c.bf16 %v1795, %v1794
  %v1810 = vpack.c.bf16 %v1796, %v1796
  %v1811 = vpack.c.bf16 %v1798, %v1797
  %v1812 = vpack.c.bf16 %v1800, %v1799
  %v1813 = vpack.c.bf16 %v1801, %v1801
  %v1815 = vsel %vm559, %v1242, 0
  %v1818 = vsel %vm559, %v1802, 0
  %v1821 = vsel %vm559, %v1803, 0
  %v1824 = vsel %vm559, %v1804, 0
  %1826 = vmatprep.subr.bf16.mxu0 0
  %1827 = vmatpush1.bf16.xpose.msra.mxu0 %v1818
  %1828 = vmatprep.subr.bf16.mxu0 0
  %1829 = vmatpush1.bf16.xpose.msra.mxu0 %v1821
  %1830 = vmatprep.subr.bf16.mxu0 0
  %1831 = vmatpush1.bf16.xpose.msra.mxu0 %v1824
  %1832 = vmatprep.subr.bf16.mxu0 0
  %1833 = vmatpush1.bf16.xpose.msra.mxu0 0
  %1834 = vmatprep.subr.bf16.mxu0 0
  %1835 = vmatpush1.bf16.xpose.msra.mxu0 0
  %1836 = vmatprep.subr.bf16.mxu0 0
  %1837 = vmatpush1.bf16.xpose.msra.mxu0 0
  %1838 = vmatprep.subr.bf16.mxu0 0
  %1839 = vmatpush1.bf16.xpose.msra.mxu0 0
  %1840 = vmatprep.subr.bf16.mxu0 0
  %1841 = vmatpush1.bf16.xpose.msra.mxu0 0
  %1842 = vmatprep.subr.bf16.mxu0 0
  %1843 = vmatpush1.bf16.xpose.msra.mxu0 0
  %1844 = vmatprep.subr.bf16.mxu0 0
  %1845 = vmatpush1.bf16.xpose.msra.mxu0 0
  %1846 = vmatprep.subr.bf16.mxu0 0
  %1847 = vmatpush1.bf16.xpose.msra.mxu0 0
  %1848 = vmatprep.subr.bf16.mxu0 0
  %1849 = vmatpush1.bf16.xpose.msra.mxu0 0
  %1850 = vmatprep.subr.bf16.mxu0 0
  %1851 = vmatpush1.bf16.xpose.msra.mxu0 0
  %1852 = vmatprep.subr.bf16.mxu0 0
  %1853 = vmatpush1.bf16.xpose.msra.mxu0 0
  %1854 = vmatprep.subr.bf16.mxu0 0
  %1855 = vmatpush1.bf16.xpose.msra.mxu0 0
  %1856 = vmatprep.subr.bf16.mxu0 0
  %1857 = vmatpush1.bf16.xpose.msra.mxu0 0
  %1858 = vmatprep.mubr.bf16.mxu0 0
  %1859 = vmatmul.mubr.bf16.gmra.mrb[0].mxu0 %v1815
  %v1860 = vpop.f32.mrb[0].mxu0
  %v1861 = vadd.f32 0.0, %v1860
  %v1862 = vpop.f32.mrb[0].mxu0
  %v1863 = vpop.f32.mrb[0].mxu0
  %v1864 = vpop.f32.mrb[0].mxu0
  %1865 = vdwg.mxu0
  %v1867 = vsel %vm559, %v1243, 0
  %v1870 = vsel %vm559, %v1805, 0
  %v1873 = vsel %vm559, %v1806, 0
  %v1876 = vsel %vm559, %v1807, 0
  %1878 = vmatprep.subr.bf16.mxu0 0
  %1879 = vmatpush1.bf16.xpose.msra.mxu0 %v1870
  %1880 = vmatprep.subr.bf16.mxu0 0
  %1881 = vmatpush1.bf16.xpose.msra.mxu0 %v1873
  %1882 = vmatprep.subr.bf16.mxu0 0
  %1883 = vmatpush1.bf16.xpose.msra.mxu0 %v1876
  %1884 = vmatprep.subr.bf16.mxu0 0
  %1885 = vmatpush1.bf16.xpose.msra.mxu0 0
  %1886 = vmatprep.subr.bf16.mxu0 0
  %1887 = vmatpush1.bf16.xpose.msra.mxu0 0
  %1888 = vmatprep.subr.bf16.mxu0 0
  %1889 = vmatpush1.bf16.xpose.msra.mxu0 0
  %1890 = vmatprep.subr.bf16.mxu0 0
  %1891 = vmatpush1.bf16.xpose.msra.mxu0 0
  %1892 = vmatprep.subr.bf16.mxu0 0
  %1893 = vmatpush1.bf16.xpose.msra.mxu0 0
  %1894 = vmatprep.subr.bf16.mxu0 0
  %1895 = vmatpush1.bf16.xpose.msra.mxu0 0
  %1896 = vmatprep.subr.bf16.mxu0 0
  %1897 = vmatpush1.bf16.xpose.msra.mxu0 0
  %1898 = vmatprep.subr.bf16.mxu0 0
  %1899 = vmatpush1.bf16.xpose.msra.mxu0 0
  %1900 = vmatprep.subr.bf16.mxu0 0
  %1901 = vmatpush1.bf16.xpose.msra.mxu0 0
  %1902 = vmatprep.subr.bf16.mxu0 0
  %1903 = vmatpush1.bf16.xpose.msra.mxu0 0
  %1904 = vmatprep.subr.bf16.mxu0 0
  %1905 = vmatpush1.bf16.xpose.msra.mxu0 0
  %1906 = vmatprep.subr.bf16.mxu0 0
  %1907 = vmatpush1.bf16.xpose.msra.mxu0 0
  %1908 = vmatprep.subr.bf16.mxu0 0
  %1909 = vmatpush1.bf16.xpose.msra.mxu0 0
  %1910 = vmatprep.mubr.bf16.mxu0 0
  %1911 = vmatmul.mubr.bf16.gmra.mrb[0].mxu0 %v1867
  %v1912 = vpop.f32.mrb[0].mxu0
  %v1913 = vadd.f32 0.0, %v1912
  %v1914 = vpop.f32.mrb[0].mxu0
  %v1915 = vpop.f32.mrb[0].mxu0
  %v1916 = vpop.f32.mrb[0].mxu0
  %1917 = vdwg.mxu0
  %v1919 = vsel %vm559, %v1244, 0
  %v1922 = vsel %vm559, %v1808, 0
  %v1925 = vsel %vm559, %v1809, 0
  %v1928 = vsel %vm559, %v1810, 0
  %1930 = vmatprep.subr.bf16.mxu0 0
  %1931 = vmatpush1.bf16.xpose.msra.mxu0 %v1922
  %1932 = vmatprep.subr.bf16.mxu0 0
  %1933 = vmatpush1.bf16.xpose.msra.mxu0 %v1925
  %1934 = vmatprep.subr.bf16.mxu0 0
  %1935 = vmatpush1.bf16.xpose.msra.mxu0 %v1928
  %1936 = vmatprep.subr.bf16.mxu0 0
  %1937 = vmatpush1.bf16.xpose.msra.mxu0 0
  %1938 = vmatprep.subr.bf16.mxu0 0
  %1939 = vmatpush1.bf16.xpose.msra.mxu0 0
  %1940 = vmatprep.subr.bf16.mxu0 0
  %1941 = vmatpush1.bf16.xpose.msra.mxu0 0
  %1942 = vmatprep.subr.bf16.mxu0 0
  %1943 = vmatpush1.bf16.xpose.msra.mxu0 0
  %1944 = vmatprep.subr.bf16.mxu0 0
  %1945 = vmatpush1.bf16.xpose.msra.mxu0 0
  %1946 = vmatprep.subr.bf16.mxu0 0
  %1947 = vmatpush1.bf16.xpose.msra.mxu0 0
  %1948 = vmatprep.subr.bf16.mxu0 0
  %1949 = vmatpush1.bf16.xpose.msra.mxu0 0
  %1950 = vmatprep.subr.bf16.mxu0 0
  %1951 = vmatpush1.bf16.xpose.msra.mxu0 0
  %1952 = vmatprep.subr.bf16.mxu0 0
  %1953 = vmatpush1.bf16.xpose.msra.mxu0 0
  %1954 = vmatprep.subr.bf16.mxu0 0
  %1955 = vmatpush1.bf16.xpose.msra.mxu0 0
  %1956 = vmatprep.subr.bf16.mxu0 0
  %1957 = vmatpush1.bf16.xpose.msra.mxu0 0
  %1958 = vmatprep.subr.bf16.mxu0 0
  %1959 = vmatpush1.bf16.xpose.msra.mxu0 0
  %1960 = vmatprep.subr.bf16.mxu0 0
  %1961 = vmatpush1.bf16.xpose.msra.mxu0 0
  %1962 = vmatprep.mubr.bf16.mxu0 0
  %1963 = vmatmul.mubr.bf16.gmra.mrb[0].mxu0 %v1919
  %v1964 = vpop.f32.mrb[0].mxu0
  %v1965 = vadd.f32 0.0, %v1964
  %v1966 = vpop.f32.mrb[0].mxu0
  %v1967 = vpop.f32.mrb[0].mxu0
  %v1968 = vpop.f32.mrb[0].mxu0
  %1969 = vdwg.mxu0
  %v1971 = vsel %vm559, %v1245, 0
  %v1974 = vsel %vm559, %v1811, 0
  %v1977 = vsel %vm559, %v1812, 0
  %v1980 = vsel %vm559, %v1813, 0
  %1982 = vmatprep.subr.bf16.mxu0 0
  %1983 = vmatpush1.bf16.xpose.msra.mxu0 %v1974
  %1984 = vmatprep.subr.bf16.mxu0 0
  %1985 = vmatpush1.bf16.xpose.msra.mxu0 %v1977
  %1986 = vmatprep.subr.bf16.mxu0 0
  %1987 = vmatpush1.bf16.xpose.msra.mxu0 %v1980
  %1988 = vmatprep.subr.bf16.mxu0 0
  %1989 = vmatpush1.bf16.xpose.msra.mxu0 0
  %1990 = vmatprep.subr.bf16.mxu0 0
  %1991 = vmatpush1.bf16.xpose.msra.mxu0 0
  %1992 = vmatprep.subr.bf16.mxu0 0
  %1993 = vmatpush1.bf16.xpose.msra.mxu0 0
  %1994 = vmatprep.subr.bf16.mxu0 0
  %1995 = vmatpush1.bf16.xpose.msra.mxu0 0
  %1996 = vmatprep.subr.bf16.mxu0 0
  %1997 = vmatpush1.bf16.xpose.msra.mxu0 0
  %1998 = vmatprep.subr.bf16.mxu0 0
  %1999 = vmatpush1.bf16.xpose.msra.mxu0 0
  %2000 = vmatprep.subr.bf16.mxu0 0
  %2001 = vmatpush1.bf16.xpose.msra.mxu0 0
  %2002 = vmatprep.subr.bf16.mxu0 0
  %2003 = vmatpush1.bf16.xpose.msra.mxu0 0
  %2004 = vmatprep.subr.bf16.mxu0 0
  %2005 = vmatpush1.bf16.xpose.msra.mxu0 0
  %2006 = vmatprep.subr.bf16.mxu0 0
  %2007 = vmatpush1.bf16.xpose.msra.mxu0 0
  %2008 = vmatprep.subr.bf16.mxu0 0
  %2009 = vmatpush1.bf16.xpose.msra.mxu0 0
  %2010 = vmatprep.subr.bf16.mxu0 0
  %2011 = vmatpush1.bf16.xpose.msra.mxu0 0
  %2012 = vmatprep.subr.bf16.mxu0 0
  %2013 = vmatpush1.bf16.xpose.msra.mxu0 0
  %2014 = vmatprep.mubr.bf16.mxu0 0
  %2015 = vmatmul.mubr.bf16.gmra.mrb[0].mxu0 %v1971
  %v2016 = vpop.f32.mrb[0].mxu0
  %v2017 = vadd.f32 0.0, %v2016
  %v2018 = vpop.f32.mrb[0].mxu0
  %v2019 = vpop.f32.mrb[0].mxu0
  %v2020 = vpop.f32.mrb[0].mxu0
  %2021 = vdwg.mxu0
  %v2022 = vpack.c.bf16 %v1913, %v1861
  %v2023 = vpack.c.bf16 %v2017, %v1965
  %2024 = vxpose.xlu0.c.b16.start [1/8] %v2022, 128
  %2025 = vxpose.xlu0.c.b16.cont [2/8] %v2023, 128
  %2026 = vxpose.xlu0.c.b16.cont [3/8] 0, 128
  %2027 = vxpose.xlu0.c.b16.cont [4/8] 0, 128
  %2028 = vxpose.xlu0.c.b16.cont [5/8] 0, 128
  %2029 = vxpose.xlu0.c.b16.cont [6/8] 0, 128
  %2030 = vxpose.xlu0.c.b16.cont [7/8] 0, 128
  %2031 = vxpose.xlu0.c.b16.end [8/8] 0, 128
  %v2032 = vpop.trf.xlu0
  %v2033 = vpop.trf.xlu0
  %v2034 = vpop.trf.xlu0
  %v2035 = vpop.trf.xlu0
  %v2036 = vpop.trf.xlu0
  %v2037 = vpop.trf.xlu0
  %v2038 = vpop.trf.xlu0
  %v2039 = vpop.trf.xlu0
  %v2041 = vsel %vm81, %v2032, 0
  %v2044 = vsel %vm81, %v2033, 0
  %v2047 = vsel %vm81, %v2034, 0
  %2049 = vmatprep.subr.bf16.mxu0 0
  %2050 = vmatpush1.bf16.msra.mxu0 %v1033
  %2051 = vmatprep.subr.bf16.mxu0 0
  %2052 = vmatpush1.bf16.msra.mxu0 %v1034
  %2053 = vmatprep.subr.bf16.mxu0 0
  %2054 = vmatpush1.bf16.msra.mxu0 0
  %2055 = vmatprep.subr.bf16.mxu0 0
  %2056 = vmatpush1.bf16.msra.mxu0 0
  %2057 = vmatprep.subr.bf16.mxu0 0
  %2058 = vmatpush1.bf16.msra.mxu0 0
  %2059 = vmatprep.subr.bf16.mxu0 0
  %2060 = vmatpush1.bf16.msra.mxu0 0
  %2061 = vmatprep.subr.bf16.mxu0 0
  %2062 = vmatpush1.bf16.msra.mxu0 0
  %2063 = vmatprep.subr.bf16.mxu0 0
  %2064 = vmatpush1.bf16.msra.mxu0 0
  %2065 = vmatprep.subr.bf16.mxu0 0
  %2066 = vmatpush1.bf16.msra.mxu0 0
  %2067 = vmatprep.subr.bf16.mxu0 0
  %2068 = vmatpush1.bf16.msra.mxu0 0
  %2069 = vmatprep.subr.bf16.mxu0 0
  %2070 = vmatpush1.bf16.msra.mxu0 0
  %2071 = vmatprep.subr.bf16.mxu0 0
  %2072 = vmatpush1.bf16.msra.mxu0 0
  %2073 = vmatprep.subr.bf16.mxu0 0
  %2074 = vmatpush1.bf16.msra.mxu0 0
  %2075 = vmatprep.subr.bf16.mxu0 0
  %2076 = vmatpush1.bf16.msra.mxu0 0
  %2077 = vmatprep.subr.bf16.mxu0 0
  %2078 = vmatpush1.bf16.msra.mxu0 0
  %2079 = vmatprep.subr.bf16.mxu0 0
  %2080 = vmatpush1.bf16.msra.mxu0 0
  %2081 = vmatprep.mubr.bf16.mxu0 0
  %2082 = vmatmul.mubr.bf16.gmra.mrb[0].mxu0 %v2041
  %v2083 = vpop.f32.mrb[0].mxu0
  %v2084 = vadd.f32 %v1007, %v2083
  %v2085 = vpop.f32.mrb[0].mxu0
  %v2086 = vpop.f32.mrb[0].mxu0
  %v2087 = vadd.f32 %v1007, %v2086
  %v2088 = vpop.f32.mrb[0].mxu0
  %2089 = vmatprep.mubr.bf16.mxu0 0
  %2090 = vmatmul.mubr.bf16.gmra.mrb[0].mxu0 %v2044
  %v2091 = vpop.f32.mrb[0].mxu0
  %v2092 = vadd.f32 %v1007, %v2091
  %v2093 = vpop.f32.mrb[0].mxu0
  %v2094 = vpop.f32.mrb[0].mxu0
  %v2095 = vadd.f32 %v1007, %v2094
  %v2096 = vpop.f32.mrb[0].mxu0
  %2097 = vmatprep.mubr.bf16.mxu0 0
  %2098 = vmatmul.mubr.bf16.gmra.mrb[0].mxu0 %v2047
  %v2099 = vpop.f32.mrb[0].mxu0
  %v2100 = vadd.f32 %v1007, %v2099
  %v2101 = vpop.f32.mrb[0].mxu0
  %v2102 = vpop.f32.mrb[0].mxu0
  %v2103 = vpop.f32.mrb[0].mxu0
  %2104 = vdwg.mxu0
  %s2105 = scalar_lea.vmem %s4, 40
  %2106 = vst.msk [vmem:[%s2105] sm:$0xff] %vm81, %v2084
  %2107 = vst.msk [vmem:[%s2105 + $0x8] sm:$0xff] %vm81, %v2087
  %2108 = vst.msk [vmem:[%s2105 + $0x10] sm:$0xff] %vm81, %v2092
  %2109 = vst.msk [vmem:[%s2105 + $0x18] sm:$0xff] %vm81, %v2095
  %2110 = vst.msk [vmem:[%s2105 + $0x20] sm:$0x1] %vm1106, %v2100
  // Predicated region
  $region18: #{tpu_custom_call.1} parent=0 // pred_check
    _
  $region19: #{tpu_custom_call.1} parent=0 // pred_check_branch
    %2112 = sbr.rel (0) target = $region21
  $region20: #{tpu_custom_call.1} parent=0 // pred_region
    _
  $region21: #{tpu_custom_call.1} parent=0 // pred_fallthru
    _
  // Predicated region
  $region22: #{tpu_custom_call.1} parent=0 // pred_check
    _
  $region23: #{tpu_custom_call.1} parent=0 // pred_check_branch
    %2114 = sbr.rel (0) target = $region25
  $region24: #{tpu_custom_call.1} parent=0 // pred_region
    _
  $region25: #{tpu_custom_call.1} parent=0 // pred_fallthru
    _

</llo_original>
